<compile_context>
chip_gen: v5e
topology: v5e:2x2
jax: 0.10.0
libtpu: 0.0.40
codegen_flags: <defaults>
</compile_context>

<pallas_src>
import numpy as np
import jax
import jax.numpy as jnp
from jax.experimental import pallas as pl
from jax.experimental.pallas import tpu as pltpu


def _make_kernel(eps, n_shift):
    def kernel(x_ref, d_ref, gm_ref, gamma_ref, beta_ref, s_ref, wp_ref, bc_ref, o_ref):
        x = x_ref[0]                          # (C_in, HW) f32, lane-dense
        h = x + d_ref[0]                      # + Dense(embed) bias column (C_in, 1)

        # GroupNorm: per-channel lane sums, then a tiny (C_in,C_in) group-
        # membership matmul (1/(cg*H*W) folded in) maps channel sums to
        # per-group mean / var.
        s = jnp.sum(h, axis=1, keepdims=True)                                 # (C_in, 1)
        mean = jnp.dot(gm_ref[...], s, preferred_element_type=jnp.float32)    # (C_in, 1)
        cen = h - mean
        ssq = jnp.sum(cen * cen, axis=1, keepdims=True)                       # (C_in, 1)
        var = jnp.dot(gm_ref[...], ssq, preferred_element_type=jnp.float32)   # (C_in, 1)
        hn = cen * jax.lax.rsqrt(var + eps) * gamma_ref[...] + beta_ref[...]

        # SiLU: x * sigmoid(x); reciprocal on the EUP (approx, free slot).
        a = hn * pl.reciprocal(1.0 + jnp.exp(-hn), approx=True)
        a16 = a.astype(jnp.bfloat16)

        # ConvTranspose2d (k=3, stride=2, output_padding=1) as 4 output
        # parities.  S_d is an exact 0/1 spatial shift (gather) matrix,
        # Wp_d packs the <=4 taps feeding each parity (zero rows for taps
        # that fall outside the 3x3 kernel).  Everything accumulates in f32.
        acc = None
        for d in range(n_shift):
            sh = jnp.dot(a16, s_ref[d], preferred_element_type=jnp.float32)   # (C_in, HW1)
            sh16 = sh.astype(jnp.bfloat16)                                    # exact recast
            t = jnp.dot(wp_ref[d], sh16, preferred_element_type=jnp.float32)  # (4*C_out, HW1)
            acc = t if acc is None else acc + t
        o_ref[0] = acc + bc_ref[...]
    return kernel


def resblock_up_one(x_nchw, embed, params, num_groups, eps=1e-5):
    Wd, bd, gamma, beta, Wc, bc = (params[k] for k in ("Wd", "bd", "gamma", "beta", "Wc", "bc"))
    N, C_in, H, W = x_nchw.shape
    C_out = Wc.shape[1]
    HW = H * W
    Hp, Wp1 = H + 1, W + 1
    HW1 = Hp * Wp1
    cg = C_in // num_groups

    # ---- glue: parameter packing & layout (plain JAX / numpy) ----
    # Dense(embed) for all N as one small matmul, shipped per-n as (C_in, 1).
    dcol = (embed.astype(jnp.float32) @ jnp.asarray(Wd, jnp.float32).T
            + jnp.asarray(bd, jnp.float32)).reshape(N, C_in, 1)

    # Activations channels-first with flattened spatial on the lane axis.
    x_flat = x_nchw.reshape(N, C_in, HW).astype(jnp.float32)

    # Group-membership matrix with the 1/(cg*H*W) normalization folded in.
    gidx = np.arange(C_in) // cg
    gm = jnp.asarray((gidx[:, None] == gidx[None, :]).astype(np.float32) / float(cg * HW))
    gamma2 = jnp.asarray(gamma, jnp.float32).reshape(C_in, 1)
    beta2 = jnp.asarray(beta, jnp.float32).reshape(C_in, 1)

    # Shift matrices S_d: (H*W) -> ((H+1)*(W+1)) spatial scatter for shift
    # d = (dh, dw); one nonzero per column, so exact in bf16.
    S = np.zeros((4, HW, HW1), np.float32)
    ih = np.arange(H)[:, None]
    iw = np.arange(W)[None, :]
    in_idx = (ih * W + iw).ravel()
    for dh in range(2):
        for dw in range(2):
            out_idx = ((ih + dh) * Wp1 + (iw + dw)).ravel()
            S[dh * 2 + dw, in_idx, out_idx] = 1.0
    S = jnp.asarray(S, jnp.bfloat16)

    # Parity-packed ConvTranspose weights: Wpk[d, r*C_out + o, c] holds tap
    # (rh+2dh, rw+2dw) transposed, or zero if that tap falls outside 3x3.
    Wc_np = np.asarray(Wc, np.float32)
    Wpk = np.zeros((4, 4 * C_out, C_in), np.float32)
    for dh in range(2):
        for dw in range(2):
            dd = dh * 2 + dw
            for rh in range(2):
                for rw in range(2):
                    kh, kw = rh + 2 * dh, rw + 2 * dw
                    if kh > 2 or kw > 2:
                        continue
                    r = rh * 2 + rw
                    Wpk[dd, r * C_out:(r + 1) * C_out, :] = Wc_np[:, :, kh, kw].T
    Wpk = jnp.asarray(Wpk, jnp.bfloat16)

    # Bias tiled once per parity plane.
    bc_tiled = jnp.tile(jnp.asarray(bc, jnp.float32), 4).reshape(4 * C_out, 1)

    kernel = _make_kernel(eps, 4)

    grid_spec = pltpu.PrefetchScalarGridSpec(
        num_scalar_prefetch=0,
        grid=(N,),
        in_specs=[
            pl.BlockSpec((1, C_in, HW), lambda n: (n, 0, 0)),          # x (C_in, H*W)
            pl.BlockSpec((1, C_in, 1), lambda n: (n, 0, 0)),           # Dense(embed) column
            pl.BlockSpec((C_in, C_in), lambda n: (0, 0)),              # group membership / cnt
            pl.BlockSpec((C_in, 1), lambda n: (0, 0)),                 # GN gamma
            pl.BlockSpec((C_in, 1), lambda n: (0, 0)),                 # GN beta
            pl.BlockSpec((4, HW, HW1), lambda n: (0, 0, 0)),           # shift matrices (bf16)
            pl.BlockSpec((4, 4 * C_out, C_in), lambda n: (0, 0, 0)),   # parity-packed W (bf16)
            pl.BlockSpec((4 * C_out, 1), lambda n: (0, 0)),            # convT bias (tiled)
        ],
        out_specs=pl.BlockSpec((1, 4 * C_out, HW1), lambda n: (n, 0, 0)),
    )

    parity = pl.pallas_call(
        kernel,
        out_shape=jax.ShapeDtypeStruct((N, 4 * C_out, HW1), jnp.float32),
        grid_spec=grid_spec,
        compiler_params=pltpu.CompilerParams(
            dimension_semantics=("parallel",),        # batch is independent -> megacore on v7x
            vmem_limit_bytes=32 * 1024 * 1024,        # explicit scoped VMEM budget
        ),
    )(x_flat, dcol, gm, gamma2, beta2, S, Wpk, bc_tiled)

    # ---- glue: pure data movement — interleave the 4 parity planes ----
    # out[n, o, 2h'+rh, 2w'+rw] = parity[n, (rh*2+rw)*C_out + o, h'*(W+1)+w']
    planes = parity.reshape(N, 2, 2, C_out, Hp, Wp1)
    out = jnp.transpose(planes, (0, 3, 4, 1, 5, 2)).reshape(N, C_out, 2 * H + 2, 2 * W + 2)
    return out


def ref_forward(x, embed, params, G, eps=1e-5):
    x = np.asarray(x, np.float64)
    embed = np.asarray(embed, np.float64)
    Wd = np.asarray(params["Wd"], np.float64); bd = np.asarray(params["bd"], np.float64)
    gamma = np.asarray(params["gamma"], np.float64); beta = np.asarray(params["beta"], np.float64)
    Wc = np.asarray(params["Wc"], np.float64); bc = np.asarray(params["bc"], np.float64)
    N, C, H, W = x.shape
    C_out = Wc.shape[1]
    d = embed @ Wd.T + bd
    h = x + d[:, :, None, None]
    cg = C // G
    hg = h.reshape(N, G, cg * H * W)
    mu = hg.mean(-1, keepdims=True)
    var = ((hg - mu) ** 2).mean(-1, keepdims=True)
    hn = ((hg - mu) / np.sqrt(var + eps)).reshape(N, C, H, W)
    hn = hn * gamma[None, :, None, None] + beta[None, :, None, None]
    a = hn / (1.0 + np.exp(-hn))                                   # SiLU
    out = np.zeros((N, C_out, 2 * H + 2, 2 * W + 2)) + bc[None, :, None, None]
    for kh in range(3):
        for kw in range(3):
            contrib = np.einsum("nchw,cd->ndhw", a, Wc[:, :, kh, kw])
            out[:, :, kh:kh + 2 * H:2, kw:kw + 2 * W:2] += contrib
    return out


if __name__ == "__main__":
    N, C_in, C_out, H, W, E, G = 2, 4, 8, 16, 16, 32, 2
    key = jax.random.PRNGKey(0)
    ks = jax.random.split(key, 8)
    x = jax.random.normal(ks[0], (N, C_in, H, W), jnp.float32)
    embed = jax.random.normal(ks[1], (N, E), jnp.float32)
    params = dict(
        Wd=0.3 * jax.random.normal(ks[2], (C_in, E), jnp.float32),
        bd=0.1 * jax.random.normal(ks[3], (C_in,), jnp.float32),
        gamma=1.0 + 0.1 * jax.random.normal(ks[4], (C_in,), jnp.float32),
        beta=0.1 * jax.random.normal(ks[5], (C_in,), jnp.float32),
        Wc=0.2 * jax.random.normal(ks[6], (C_in, C_out, 3, 3), jnp.float32),
        bc=0.1 * jax.random.normal(ks[7], (C_out,), jnp.float32),
    )

    out = resblock_up_one(x, embed, params, num_groups=G)
    out = jax.block_until_ready(out)

    assert out.shape == (N, C_out, 2 * H + 2, 2 * W + 2), out.shape
    ref = ref_forward(np.asarray(x), np.asarray(embed), params, G)
    err = float(np.max(np.abs(np.asarray(out, np.float64) - ref)))
    # Tolerance is looser than a pure-f32 variant (~1e-5) because the conv
    # matmuls run with bf16 MXU inputs and SiLU uses the approx EUP
    # reciprocal; expected max abs error is a few 1e-2 at these magnitudes.
    if err > 1e-1:
        raise AssertionError(f"mismatch vs reference, max abs err = {err}")
    print("KERNEL_OK")
</pallas_src>

<mosaic_0001>
module attributes {stable_mosaic.version = 11 : i64} {
  func.func @kernel(%arg0: i32, %arg1: memref<1x4x256xf32, #tpu.memory_space<vmem>>, %arg2: memref<1x4x1xf32, #tpu.memory_space<vmem>>, %arg3: memref<4x4xf32, #tpu.memory_space<vmem>>, %arg4: memref<4x1xf32, #tpu.memory_space<vmem>>, %arg5: memref<4x1xf32, #tpu.memory_space<vmem>>, %arg6: memref<4x256x289xbf16, #tpu.memory_space<vmem>>, %arg7: memref<4x32x4xbf16, #tpu.memory_space<vmem>>, %arg8: memref<32x1xf32, #tpu.memory_space<vmem>>, %arg9: memref<1x32x289xf32, #tpu.memory_space<vmem>>) attributes {dimension_semantics = [#tpu.dimension_semantics<parallel>], iteration_bounds = array<i64: 2>, scalar_prefetch = 0 : i64, scratch_operands = 0 : i64, tpu.core_type = #tpu.core_type<tc>, window_params = [{transform_indices = @transform_0, window_bounds = array<i64: 1, 4, 256>}, {transform_indices = @transform_1, window_bounds = array<i64: 1, 4, 1>}, {pipeline_mode = #tpu.pipeline_mode<synchronous>, transform_indices = @transform_2, window_bounds = array<i64: 4, 4>}, {pipeline_mode = #tpu.pipeline_mode<synchronous>, transform_indices = @transform_3, window_bounds = array<i64: 4, 1>}, {pipeline_mode = #tpu.pipeline_mode<synchronous>, transform_indices = @transform_4, window_bounds = array<i64: 4, 1>}, {pipeline_mode = #tpu.pipeline_mode<synchronous>, transform_indices = @transform_5, window_bounds = array<i64: 4, 256, 289>}, {pipeline_mode = #tpu.pipeline_mode<synchronous>, transform_indices = @transform_6, window_bounds = array<i64: 4, 32, 4>}, {pipeline_mode = #tpu.pipeline_mode<synchronous>, transform_indices = @transform_7, window_bounds = array<i64: 32, 1>}, {transform_indices = @transform_8, window_bounds = array<i64: 1, 32, 289>}]} {
    %c0 = arith.constant 0 : index
    %c0_0 = arith.constant 0 : index
    %c0_1 = arith.constant 0 : index
    %0 = vector.load %arg1[%c0, %c0_0, %c0_1] : memref<1x4x256xf32, #tpu.memory_space<vmem>>, vector<1x4x256xf32>
    %1 = vector.shape_cast %0 : vector<1x4x256xf32> to vector<4x256xf32>
    %c0_2 = arith.constant 0 : index
    %c0_3 = arith.constant 0 : index
    %c0_4 = arith.constant 0 : index
    %2 = vector.load %arg2[%c0_2, %c0_3, %c0_4] : memref<1x4x1xf32, #tpu.memory_space<vmem>>, vector<1x4x1xf32>
    %3 = vector.shape_cast %2 : vector<1x4x1xf32> to vector<4x1xf32>
    %4 = vector.broadcast %3 : vector<4x1xf32> to vector<4x256xf32>
    %5 = arith.addf %1, %4 : vector<4x256xf32>
    %cst = arith.constant dense<0.000000e+00> : vector<4xf32>
    %6 = vector.multi_reduction <add>, %5, %cst [1] : vector<4x256xf32> to vector<4xf32>
    %7 = vector.shape_cast %6 : vector<4xf32> to vector<4x1xf32>
    %c0_5 = arith.constant 0 : index
    %c0_6 = arith.constant 0 : index
    %8 = vector.load %arg3[%c0_5, %c0_6] : memref<4x4xf32, #tpu.memory_space<vmem>>, vector<4x4xf32>
    %cst_7 = arith.constant dense<0.000000e+00> : vector<4x1xf32>
    %9 = tpu.matmul %8, %7, %cst_7 {dimension_numbers = #tpu.dot_dimension_numbers<[1], [0], [0], [1], [0, 0, 1, 1], [], []>} : vector<4x4xf32>, vector<4x1xf32>, vector<4x1xf32> -> vector<4x1xf32>
    %10 = vector.broadcast %9 : vector<4x1xf32> to vector<4x256xf32>
    %11 = arith.subf %5, %10 : vector<4x256xf32>
    %12 = arith.mulf %11, %11 : vector<4x256xf32>
    %cst_8 = arith.constant dense<0.000000e+00> : vector<4xf32>
    %13 = vector.multi_reduction <add>, %12, %cst_8 [1] : vector<4x256xf32> to vector<4xf32>
    %14 = vector.shape_cast %13 : vector<4xf32> to vector<4x1xf32>
    %c0_9 = arith.constant 0 : index
    %c0_10 = arith.constant 0 : index
    %15 = vector.load %arg3[%c0_9, %c0_10] : memref<4x4xf32, #tpu.memory_space<vmem>>, vector<4x4xf32>
    %cst_11 = arith.constant dense<0.000000e+00> : vector<4x1xf32>
    %16 = tpu.matmul %15, %14, %cst_11 {dimension_numbers = #tpu.dot_dimension_numbers<[1], [0], [0], [1], [0, 0, 1, 1], [], []>} : vector<4x4xf32>, vector<4x1xf32>, vector<4x1xf32> -> vector<4x1xf32>
    %cst_12 = arith.constant 9.99999974E-6 : f32
    %17 = vector.broadcast %cst_12 : f32 to vector<4x1xf32>
    %18 = arith.addf %16, %17 : vector<4x1xf32>
    %19 = math.rsqrt %18 : vector<4x1xf32>
    %20 = vector.broadcast %19 : vector<4x1xf32> to vector<4x256xf32>
    %21 = arith.mulf %11, %20 : vector<4x256xf32>
    %c0_13 = arith.constant 0 : index
    %c0_14 = arith.constant 0 : index
    %22 = vector.load %arg4[%c0_13, %c0_14] : memref<4x1xf32, #tpu.memory_space<vmem>>, vector<4x1xf32>
    %23 = vector.broadcast %22 : vector<4x1xf32> to vector<4x256xf32>
    %24 = arith.mulf %21, %23 : vector<4x256xf32>
    %c0_15 = arith.constant 0 : index
    %c0_16 = arith.constant 0 : index
    %25 = vector.load %arg5[%c0_15, %c0_16] : memref<4x1xf32, #tpu.memory_space<vmem>>, vector<4x1xf32>
    %26 = vector.broadcast %25 : vector<4x1xf32> to vector<4x256xf32>
    %27 = arith.addf %24, %26 : vector<4x256xf32>
    %cst_17 = arith.constant 0.000000e+00 : f32
    %28 = vector.broadcast %cst_17 : f32 to vector<4x256xf32>
    %29 = arith.subf %28, %27 : vector<4x256xf32>
    %30 = math.exp %29 : vector<4x256xf32>
    %cst_18 = arith.constant 1.000000e+00 : f32
    %31 = vector.broadcast %cst_18 : f32 to vector<4x256xf32>
    %32 = arith.addf %31, %30 : vector<4x256xf32>
    %33 = tpu.reciprocal %32 {approx = true} : vector<4x256xf32> -> vector<4x256xf32>
    %34 = arith.mulf %27, %33 : vector<4x256xf32>
    %35 = arith.truncf %34 : vector<4x256xf32> to vector<4x256xbf16>
    %c0_19 = arith.constant 0 : index
    %c0_20 = arith.constant 0 : index
    %c0_21 = arith.constant 0 : index
    %36 = vector.load %arg6[%c0_19, %c0_20, %c0_21] : memref<4x256x289xbf16, #tpu.memory_space<vmem>>, vector<1x256x289xbf16>
    %37 = vector.shape_cast %36 : vector<1x256x289xbf16> to vector<256x289xbf16>
    %cst_22 = arith.constant dense<0.000000e+00> : vector<4x289xf32>
    %38 = tpu.matmul %35, %37, %cst_22 {dimension_numbers = #tpu.dot_dimension_numbers<[1], [0], [0], [1], [0, 0, 1, 1], [], []>} : vector<4x256xbf16>, vector<256x289xbf16>, vector<4x289xf32> -> vector<4x289xf32>
    %39 = arith.truncf %38 : vector<4x289xf32> to vector<4x289xbf16>
    %c0_23 = arith.constant 0 : index
    %c0_24 = arith.constant 0 : index
    %c0_25 = arith.constant 0 : index
    %40 = vector.load %arg7[%c0_23, %c0_24, %c0_25] : memref<4x32x4xbf16, #tpu.memory_space<vmem>>, vector<1x32x4xbf16>
    %41 = vector.shape_cast %40 : vector<1x32x4xbf16> to vector<32x4xbf16>
    %cst_26 = arith.constant dense<0.000000e+00> : vector<32x289xf32>
    %42 = tpu.matmul %41, %39, %cst_26 {dimension_numbers = #tpu.dot_dimension_numbers<[1], [0], [0], [1], [0, 0, 1, 1], [], []>} : vector<32x4xbf16>, vector<4x289xbf16>, vector<32x289xf32> -> vector<32x289xf32>
    %c1 = arith.constant 1 : index
    %c0_27 = arith.constant 0 : index
    %c0_28 = arith.constant 0 : index
    %43 = vector.load %arg6[%c1, %c0_27, %c0_28] : memref<4x256x289xbf16, #tpu.memory_space<vmem>>, vector<1x256x289xbf16>
    %44 = vector.shape_cast %43 : vector<1x256x289xbf16> to vector<256x289xbf16>
    %cst_29 = arith.constant dense<0.000000e+00> : vector<4x289xf32>
    %45 = tpu.matmul %35, %44, %cst_29 {dimension_numbers = #tpu.dot_dimension_numbers<[1], [0], [0], [1], [0, 0, 1, 1], [], []>} : vector<4x256xbf16>, vector<256x289xbf16>, vector<4x289xf32> -> vector<4x289xf32>
    %46 = arith.truncf %45 : vector<4x289xf32> to vector<4x289xbf16>
    %c1_30 = arith.constant 1 : index
    %c0_31 = arith.constant 0 : index
    %c0_32 = arith.constant 0 : index
    %47 = vector.load %arg7[%c1_30, %c0_31, %c0_32] : memref<4x32x4xbf16, #tpu.memory_space<vmem>>, vector<1x32x4xbf16>
    %48 = vector.shape_cast %47 : vector<1x32x4xbf16> to vector<32x4xbf16>
    %cst_33 = arith.constant dense<0.000000e+00> : vector<32x289xf32>
    %49 = tpu.matmul %48, %46, %cst_33 {dimension_numbers = #tpu.dot_dimension_numbers<[1], [0], [0], [1], [0, 0, 1, 1], [], []>} : vector<32x4xbf16>, vector<4x289xbf16>, vector<32x289xf32> -> vector<32x289xf32>
    %50 = arith.addf %42, %49 : vector<32x289xf32>
    %c2 = arith.constant 2 : index
    %c0_34 = arith.constant 0 : index
    %c0_35 = arith.constant 0 : index
    %51 = vector.load %arg6[%c2, %c0_34, %c0_35] : memref<4x256x289xbf16, #tpu.memory_space<vmem>>, vector<1x256x289xbf16>
    %52 = vector.shape_cast %51 : vector<1x256x289xbf16> to vector<256x289xbf16>
    %cst_36 = arith.constant dense<0.000000e+00> : vector<4x289xf32>
    %53 = tpu.matmul %35, %52, %cst_36 {dimension_numbers = #tpu.dot_dimension_numbers<[1], [0], [0], [1], [0, 0, 1, 1], [], []>} : vector<4x256xbf16>, vector<256x289xbf16>, vector<4x289xf32> -> vector<4x289xf32>
    %54 = arith.truncf %53 : vector<4x289xf32> to vector<4x289xbf16>
    %c2_37 = arith.constant 2 : index
    %c0_38 = arith.constant 0 : index
    %c0_39 = arith.constant 0 : index
    %55 = vector.load %arg7[%c2_37, %c0_38, %c0_39] : memref<4x32x4xbf16, #tpu.memory_space<vmem>>, vector<1x32x4xbf16>
    %56 = vector.shape_cast %55 : vector<1x32x4xbf16> to vector<32x4xbf16>
    %cst_40 = arith.constant dense<0.000000e+00> : vector<32x289xf32>
    %57 = tpu.matmul %56, %54, %cst_40 {dimension_numbers = #tpu.dot_dimension_numbers<[1], [0], [0], [1], [0, 0, 1, 1], [], []>} : vector<32x4xbf16>, vector<4x289xbf16>, vector<32x289xf32> -> vector<32x289xf32>
    %58 = arith.addf %50, %57 : vector<32x289xf32>
    %c3 = arith.constant 3 : index
    %c0_41 = arith.constant 0 : index
    %c0_42 = arith.constant 0 : index
    %59 = vector.load %arg6[%c3, %c0_41, %c0_42] : memref<4x256x289xbf16, #tpu.memory_space<vmem>>, vector<1x256x289xbf16>
    %60 = vector.shape_cast %59 : vector<1x256x289xbf16> to vector<256x289xbf16>
    %cst_43 = arith.constant dense<0.000000e+00> : vector<4x289xf32>
    %61 = tpu.matmul %35, %60, %cst_43 {dimension_numbers = #tpu.dot_dimension_numbers<[1], [0], [0], [1], [0, 0, 1, 1], [], []>} : vector<4x256xbf16>, vector<256x289xbf16>, vector<4x289xf32> -> vector<4x289xf32>
    %62 = arith.truncf %61 : vector<4x289xf32> to vector<4x289xbf16>
    %c3_44 = arith.constant 3 : index
    %c0_45 = arith.constant 0 : index
    %c0_46 = arith.constant 0 : index
    %63 = vector.load %arg7[%c3_44, %c0_45, %c0_46] : memref<4x32x4xbf16, #tpu.memory_space<vmem>>, vector<1x32x4xbf16>
    %64 = vector.shape_cast %63 : vector<1x32x4xbf16> to vector<32x4xbf16>
    %cst_47 = arith.constant dense<0.000000e+00> : vector<32x289xf32>
    %65 = tpu.matmul %64, %62, %cst_47 {dimension_numbers = #tpu.dot_dimension_numbers<[1], [0], [0], [1], [0, 0, 1, 1], [], []>} : vector<32x4xbf16>, vector<4x289xbf16>, vector<32x289xf32> -> vector<32x289xf32>
    %66 = arith.addf %58, %65 : vector<32x289xf32>
    %c0_48 = arith.constant 0 : index
    %c0_49 = arith.constant 0 : index
    %67 = vector.load %arg8[%c0_48, %c0_49] : memref<32x1xf32, #tpu.memory_space<vmem>>, vector<32x1xf32>
    %68 = vector.broadcast %67 : vector<32x1xf32> to vector<32x289xf32>
    %69 = arith.addf %66, %68 : vector<32x289xf32>
    %c0_50 = arith.constant 0 : index
    %c0_51 = arith.constant 0 : index
    %c0_52 = arith.constant 0 : index
    %70 = vector.load %arg9[%c0_50, %c0_51, %c0_52] : memref<1x32x289xf32, #tpu.memory_space<vmem>>, vector<1x32x289xf32>
    %71 = vector.shape_cast %70 : vector<1x32x289xf32> to vector<32x289xf32>
    %72 = vector.shape_cast %69 : vector<32x289xf32> to vector<1x32x289xf32>
    tpu.vector_store %arg9[%c0_50, %c0_51, %c0_52], %72 {strides = array<i32>} : memref<1x32x289xf32, #tpu.memory_space<vmem>>, vector<1x32x289xf32>,
    return
  }
  func.func @transform_0(%arg0: i32) -> (i32, i32, i32) {
    %c0_i32 = arith.constant 0 : i32
    %c0_i32_0 = arith.constant 0 : i32
    %c0_i32_1 = arith.constant 0 : i32
    return %arg0, %c0_i32, %c0_i32_0 : i32, i32, i32
  }
  func.func @transform_1(%arg0: i32) -> (i32, i32, i32) {
    %c0_i32 = arith.constant 0 : i32
    %c0_i32_0 = arith.constant 0 : i32
    %c0_i32_1 = arith.constant 0 : i32
    return %arg0, %c0_i32, %c0_i32_0 : i32, i32, i32
  }
  func.func @transform_2(%arg0: i32) -> (i32, i32) {
    %c0_i32 = arith.constant 0 : i32
    %c0_i32_0 = arith.constant 0 : i32
    %c0_i32_1 = arith.constant 0 : i32
    return %c0_i32, %c0_i32_0 : i32, i32
  }
  func.func @transform_3(%arg0: i32) -> (i32, i32) {
    %c0_i32 = arith.constant 0 : i32
    %c0_i32_0 = arith.constant 0 : i32
    %c0_i32_1 = arith.constant 0 : i32
    return %c0_i32, %c0_i32_0 : i32, i32
  }
  func.func @transform_4(%arg0: i32) -> (i32, i32) {
    %c0_i32 = arith.constant 0 : i32
    %c0_i32_0 = arith.constant 0 : i32
    %c0_i32_1 = arith.constant 0 : i32
    return %c0_i32, %c0_i32_0 : i32, i32
  }
  func.func @transform_5(%arg0: i32) -> (i32, i32, i32) {
    %c0_i32 = arith.constant 0 : i32
    %c0_i32_0 = arith.constant 0 : i32
    %c0_i32_1 = arith.constant 0 : i32
    %c0_i32_2 = arith.constant 0 : i32
    return %c0_i32, %c0_i32_0, %c0_i32_1 : i32, i32, i32
  }
  func.func @transform_6(%arg0: i32) -> (i32, i32, i32) {
    %c0_i32 = arith.constant 0 : i32
    %c0_i32_0 = arith.constant 0 : i32
    %c0_i32_1 = arith.constant 0 : i32
    %c0_i32_2 = arith.constant 0 : i32
    return %c0_i32, %c0_i32_0, %c0_i32_1 : i32, i32, i32
  }
  func.func @transform_7(%arg0: i32) -> (i32, i32) {
    %c0_i32 = arith.constant 0 : i32
    %c0_i32_0 = arith.constant 0 : i32
    %c0_i32_1 = arith.constant 0 : i32
    return %c0_i32, %c0_i32_0 : i32, i32
  }
  func.func @transform_8(%arg0: i32) -> (i32, i32, i32) {
    %c0_i32 = arith.constant 0 : i32
    %c0_i32_0 = arith.constant 0 : i32
    %c0_i32_1 = arith.constant 0 : i32
    return %arg0, %c0_i32, %c0_i32_0 : i32, i32, i32
  }
}

</mosaic_0001>

<llo_original>
// kernel: tpu_custom_call.1
$region0: #{tpu_custom_call.1}
  #allocation0 [shape = 'u32[]', space=smem, size = 0x4, offset = 0x4, fixed_abs, tag = 'smem constant byte address 0x4 - core index']
  #allocation1 [shape = 'u32[72,128]{1,0:T(1,128)}', space=vmem, size = 0x9000, scoped, tag = 'internal scratch']
  %s0 = inlined_call_operand.vmem [shape: f32[2,4,256], index: 0, kind: input, shape index: {}]
  %s1 = inlined_call_operand.vmem [shape: f32[2,4,1], index: 1, kind: input, shape index: {}]
  %s2 = inlined_call_operand.vmem [shape: f32[4,4], index: 2, kind: input, shape index: {}]
  %s3 = inlined_call_operand.vmem [shape: f32[4,1], index: 3, kind: input, shape index: {}]
  %s4 = inlined_call_operand.vmem [shape: f32[4,1], index: 4, kind: input, shape index: {}]
  %s5 = inlined_call_operand.vmem [shape: bf16[4,256,289], index: 5, kind: input, shape index: {}]
  %s6 = inlined_call_operand.vmem [shape: bf16[4,32,4], index: 6, kind: input, shape index: {}]
  %s7 = inlined_call_operand.vmem [shape: f32[32,1], index: 7, kind: input, shape index: {}]
  %s8 = inlined_call_operand.hbm [shape: f32[2,32,289], index: 8, kind: output, shape index: {}]
  %s9 = sld [smem:[#allocation0]]
  $region65: #{tpu_custom_call.1} parent=0
    _
  %s11 = ssub.s32 1, %s9
  %s12 = scalar_select 0, %s11, %s9
  $region1: #{tpu_custom_call.1} parent=0
    #allocation2 [shape = 'u8[98304]{0}', space=vmem, size = 0x18000, scoped, tag = 'output window, operand 0']
    #allocation3 [shape = 's32[2]{0}', space=sflag, size = 0x8, scoped, tag = 'scoped memory for tpu_custom_call.1']
    %13 = vsyncpa [#allocation3], 0
    %s14 = scalar_lea.sflag [#allocation3], 1
    %15 = vsyncpa %s14, 0
    loop: start=0, step=1, limit=4
    $region2: #{tpu_custom_call.1} parent=1 // loop_pre_header
      _
    $region3: #{tpu_custom_call.1} parent=1 // loop_header
      %s17 = sphi 0, %s21
      %p18 = scmp.ge.s32.totalorder %s17, 4
      %s27 = sphi 0, %s29
      %s30 = sphi 0, %s27
      %s31 = sphi 0, %s30
      %s47 = sphi 0, %s31
      %s53 = sphi 0, %s55
      %s56 = sphi 0, %s53
      %s57 = sphi 0, %s56
      %s73 = sphi 0, %s57
      %s77 = sphi 0, %s77
      %s79 = sphi 0, %s77
      %s80 = sphi 0, %s79
      %s94 = sphi 0, %s80
      %s98 = sphi 0, %s98
      %s100 = sphi 0, %s98
      %s101 = sphi 0, %s100
      %s115 = sphi 0, %s101
      %s119 = sphi 0, %s119
      %s121 = sphi 0, %s119
      %s122 = sphi 0, %s121
      %s136 = sphi 0, %s122
      %s140 = sphi 0, %s140
      %s142 = sphi 0, %s140
      %s143 = sphi 0, %s142
      %s157 = sphi 0, %s143
      %s161 = sphi 0, %s161
      %s163 = sphi 0, %s161
      %s164 = sphi 0, %s163
      %s178 = sphi 0, %s164
      %s182 = sphi 0, %s182
      %s184 = sphi 0, %s182
      %s185 = sphi 0, %s184
      %s199 = sphi 0, %s185
      %s205 = sphi 0, %s207
      %s208 = sphi 0, %s205
      %s209 = sphi 0, %s208
      %s225 = sphi 0, %s209
    $region4: #{tpu_custom_call.1} parent=1 // loop_header_branch
      %20 = sbr.rel (%p18) target = $region8
    $region5: #{tpu_custom_call.1} parent=1 // loop_body
      %s22 = ssub.s32 %s17, 1
      %s23 = ssub.s32 %s17, 2
      %s24 = sadd.s32 %s17, 1
      %s25 = ssub.s32 %s17, %s24
      %p26 = scmp.eq.s32.totalorder %s25, 0
      %s28 = sadd.s32 %s27, 1
      %s29 = scalar_select %p26, %s27, %s28
      %p32 = pneg %p26
      %p33 = scmp.eq.s32.totalorder %s17, 1
      %p34 = por %p32, %p33
      %p35 = scmp.ne.s32.totalorder %s27, %s30
      %p36 = scmp.eq.s32.totalorder %s17, 0
      %p37 = por %p35, %p36
      %p38 = scmp.ne.s32.totalorder %s27, %s30
      %p39 = scmp.eq.s32.totalorder %s22, 1
      %p40 = por %p38, %p39
      %p41 = scmp.ne.s32.totalorder %s30, %s31
      %p42 = scmp.eq.s32.totalorder %s22, 0
      %p43 = por %p41, %p42
      %p44 = scmp.ne.s32.totalorder %s30, %s31
      %p45 = scmp.eq.s32.totalorder %s23, 1
      %p46 = por %p44, %p45
      %p48 = scmp.ne.s32.totalorder %s31, %s47
      %p49 = scmp.eq.s32.totalorder %s23, 0
      %p50 = por %p48, %p49
      %s51 = ssub.s32 %s17, %s24
      %p52 = scmp.eq.s32.totalorder %s51, 0
      %s54 = sadd.s32 %s53, 1
      %s55 = scalar_select %p52, %s53, %s54
      %p58 = pneg %p52
      %p59 = scmp.eq.s32.totalorder %s17, 1
      %p60 = por %p58, %p59
      %p61 = scmp.ne.s32.totalorder %s53, %s56
      %p62 = scmp.eq.s32.totalorder %s17, 0
      %p63 = por %p61, %p62
      %p64 = scmp.ne.s32.totalorder %s53, %s56
      %p65 = scmp.eq.s32.totalorder %s22, 1
      %p66 = por %p64, %p65
      %p67 = scmp.ne.s32.totalorder %s56, %s57
      %p68 = scmp.eq.s32.totalorder %s22, 0
      %p69 = por %p67, %p68
      %p70 = scmp.ne.s32.totalorder %s56, %s57
      %p71 = scmp.eq.s32.totalorder %s23, 1
      %p72 = por %p70, %p71
      %p74 = scmp.ne.s32.totalorder %s57, %s73
      %p75 = scmp.eq.s32.totalorder %s23, 0
      %p76 = por %p74, %p75
      %s78 = sadd.s32 %s77, 1
      %p81 = scmp.eq.s32.totalorder %s17, 1
      %p82 = scmp.ne.s32.totalorder %s77, %s79
      %p83 = scmp.eq.s32.totalorder %s17, 0
      %p84 = por %p82, %p83
      %p85 = scmp.ne.s32.totalorder %s77, %s79
      %p86 = scmp.eq.s32.totalorder %s22, 1
      %p87 = por %p85, %p86
      %p88 = scmp.ne.s32.totalorder %s79, %s80
      %p89 = scmp.eq.s32.totalorder %s22, 0
      %p90 = por %p88, %p89
      %p91 = scmp.ne.s32.totalorder %s79, %s80
      %p92 = scmp.eq.s32.totalorder %s23, 1
      %p93 = por %p91, %p92
      %p95 = scmp.ne.s32.totalorder %s80, %s94
      %p96 = scmp.eq.s32.totalorder %s23, 0
      %p97 = por %p95, %p96
      %s99 = sadd.s32 %s98, 1
      %p102 = scmp.eq.s32.totalorder %s17, 1
      %p103 = scmp.ne.s32.totalorder %s98, %s100
      %p104 = scmp.eq.s32.totalorder %s17, 0
      %p105 = por %p103, %p104
      %p106 = scmp.ne.s32.totalorder %s98, %s100
      %p107 = scmp.eq.s32.totalorder %s22, 1
      %p108 = por %p106, %p107
      %p109 = scmp.ne.s32.totalorder %s100, %s101
      %p110 = scmp.eq.s32.totalorder %s22, 0
      %p111 = por %p109, %p110
      %p112 = scmp.ne.s32.totalorder %s100, %s101
      %p113 = scmp.eq.s32.totalorder %s23, 1
      %p114 = por %p112, %p113
      %p116 = scmp.ne.s32.totalorder %s101, %s115
      %p117 = scmp.eq.s32.totalorder %s23, 0
      %p118 = por %p116, %p117
      %s120 = sadd.s32 %s119, 1
      %p123 = scmp.eq.s32.totalorder %s17, 1
      %p124 = scmp.ne.s32.totalorder %s119, %s121
      %p125 = scmp.eq.s32.totalorder %s17, 0
      %p126 = por %p124, %p125
      %p127 = scmp.ne.s32.totalorder %s119, %s121
      %p128 = scmp.eq.s32.totalorder %s22, 1
      %p129 = por %p127, %p128
      %p130 = scmp.ne.s32.totalorder %s121, %s122
      %p131 = scmp.eq.s32.totalorder %s22, 0
      %p132 = por %p130, %p131
      %p133 = scmp.ne.s32.totalorder %s121, %s122
      %p134 = scmp.eq.s32.totalorder %s23, 1
      %p135 = por %p133, %p134
      %p137 = scmp.ne.s32.totalorder %s122, %s136
      %p138 = scmp.eq.s32.totalorder %s23, 0
      %p139 = por %p137, %p138
      %s141 = sadd.s32 %s140, 1
      %p144 = scmp.eq.s32.totalorder %s17, 1
      %p145 = scmp.ne.s32.totalorder %s140, %s142
      %p146 = scmp.eq.s32.totalorder %s17, 0
      %p147 = por %p145, %p146
      %p148 = scmp.ne.s32.totalorder %s140, %s142
      %p149 = scmp.eq.s32.totalorder %s22, 1
      %p150 = por %p148, %p149
      %p151 = scmp.ne.s32.totalorder %s142, %s143
      %p152 = scmp.eq.s32.totalorder %s22, 0
      %p153 = por %p151, %p152
      %p154 = scmp.ne.s32.totalorder %s142, %s143
      %p155 = scmp.eq.s32.totalorder %s23, 1
      %p156 = por %p154, %p155
      %p158 = scmp.ne.s32.totalorder %s143, %s157
      %p159 = scmp.eq.s32.totalorder %s23, 0
      %p160 = por %p158, %p159
      %s162 = sadd.s32 %s161, 1
      %p165 = scmp.eq.s32.totalorder %s17, 1
      %p166 = scmp.ne.s32.totalorder %s161, %s163
      %p167 = scmp.eq.s32.totalorder %s17, 0
      %p168 = por %p166, %p167
      %p169 = scmp.ne.s32.totalorder %s161, %s163
      %p170 = scmp.eq.s32.totalorder %s22, 1
      %p171 = por %p169, %p170
      %p172 = scmp.ne.s32.totalorder %s163, %s164
      %p173 = scmp.eq.s32.totalorder %s22, 0
      %p174 = por %p172, %p173
      %p175 = scmp.ne.s32.totalorder %s163, %s164
      %p176 = scmp.eq.s32.totalorder %s23, 1
      %p177 = por %p175, %p176
      %p179 = scmp.ne.s32.totalorder %s164, %s178
      %p180 = scmp.eq.s32.totalorder %s23, 0
      %p181 = por %p179, %p180
      %s183 = sadd.s32 %s182, 1
      %p186 = scmp.eq.s32.totalorder %s17, 1
      %p187 = scmp.ne.s32.totalorder %s182, %s184
      %p188 = scmp.eq.s32.totalorder %s17, 0
      %p189 = por %p187, %p188
      %p190 = scmp.ne.s32.totalorder %s182, %s184
      %p191 = scmp.eq.s32.totalorder %s22, 1
      %p192 = por %p190, %p191
      %p193 = scmp.ne.s32.totalorder %s184, %s185
      %p194 = scmp.eq.s32.totalorder %s22, 0
      %p195 = por %p193, %p194
      %p196 = scmp.ne.s32.totalorder %s184, %s185
      %p197 = scmp.eq.s32.totalorder %s23, 1
      %p198 = por %p196, %p197
      %p200 = scmp.ne.s32.totalorder %s185, %s199
      %p201 = scmp.eq.s32.totalorder %s23, 0
      %p202 = por %p200, %p201
      %s203 = ssub.s32 %s17, %s24
      %p204 = scmp.eq.s32.totalorder %s203, 0
      %s206 = sadd.s32 %s205, 1
      %s207 = scalar_select %p204, %s205, %s206
      %p210 = pneg %p204
      %p211 = scmp.eq.s32.totalorder %s17, 1
      %p212 = por %p210, %p211
      %p213 = scmp.ne.s32.totalorder %s205, %s208
      %p214 = scmp.eq.s32.totalorder %s17, 0
      %p215 = por %p213, %p214
      %p216 = scmp.ne.s32.totalorder %s205, %s208
      %p217 = scmp.eq.s32.totalorder %s22, 1
      %p218 = por %p216, %p217
      %p219 = scmp.ne.s32.totalorder %s208, %s209
      %p220 = scmp.eq.s32.totalorder %s22, 0
      %p221 = por %p219, %p220
      %p222 = scmp.ne.s32.totalorder %s208, %s209
      %p223 = scmp.eq.s32.totalorder %s23, 1
      %p224 = por %p222, %p223
      %p226 = scmp.ne.s32.totalorder %s209, %s225
      %p227 = scmp.eq.s32.totalorder %s23, 0
      %p228 = por %p226, %p227
      %p229 = scmp.le.s32.totalorder 1, %s17
      %p230 = scmp.lt.s32.totalorder %s17, 3
      %p231 = pnand %p229, %p230
      %p232 = pneg %p231
      // Predicated region
      $region9: #{tpu_custom_call.1} parent=5 // pred_check
        _
      $region10: #{tpu_custom_call.1} parent=5 // pred_check_branch
        %234 = sbr.rel (%p231) target = $region12
      $region11: #{tpu_custom_call.1} parent=5 // pred_region
        %s235 = ssub.s32 %s17, 1
        // Predicated region
        $region13: #{tpu_custom_call.1} parent=11 // pred_check
          %p236 = pneg %p90
        $region14: #{tpu_custom_call.1} parent=11 // pred_check_branch
          %238 = sbr.rel (%p236) target = $region16
        $region15: #{tpu_custom_call.1} parent=11 // pred_region
          _
        $region16: #{tpu_custom_call.1} parent=11 // pred_fallthru
          _
        // Predicated region
        $region17: #{tpu_custom_call.1} parent=11 // pred_check
          %p239 = pneg %p111
        $region18: #{tpu_custom_call.1} parent=11 // pred_check_branch
          %241 = sbr.rel (%p239) target = $region20
        $region19: #{tpu_custom_call.1} parent=11 // pred_region
          _
        $region20: #{tpu_custom_call.1} parent=11 // pred_fallthru
          _
        // Predicated region
        $region21: #{tpu_custom_call.1} parent=11 // pred_check
          %p242 = pneg %p132
        $region22: #{tpu_custom_call.1} parent=11 // pred_check_branch
          %244 = sbr.rel (%p242) target = $region24
        $region23: #{tpu_custom_call.1} parent=11 // pred_region
          _
        $region24: #{tpu_custom_call.1} parent=11 // pred_fallthru
          _
        // Predicated region
        $region25: #{tpu_custom_call.1} parent=11 // pred_check
          %p245 = pneg %p153
        $region26: #{tpu_custom_call.1} parent=11 // pred_check_branch
          %247 = sbr.rel (%p245) target = $region28
        $region27: #{tpu_custom_call.1} parent=11 // pred_region
          _
        $region28: #{tpu_custom_call.1} parent=11 // pred_fallthru
          _
        // Predicated region
        $region29: #{tpu_custom_call.1} parent=11 // pred_check
          %p248 = pneg %p174
        $region30: #{tpu_custom_call.1} parent=11 // pred_check_branch
          %250 = sbr.rel (%p248) target = $region32
        $region31: #{tpu_custom_call.1} parent=11 // pred_region
          _
        $region32: #{tpu_custom_call.1} parent=11 // pred_fallthru
          _
        // Predicated region
        $region33: #{tpu_custom_call.1} parent=11 // pred_check
          %p251 = pneg %p195
        $region34: #{tpu_custom_call.1} parent=11 // pred_check_branch
          %253 = sbr.rel (%p251) target = $region36
        $region35: #{tpu_custom_call.1} parent=11 // pred_region
          _
        $region36: #{tpu_custom_call.1} parent=11 // pred_fallthru
          _
      $region12: #{tpu_custom_call.1} parent=5 // pred_fallthru
        _
      %p254 = scmp.lt.s32.totalorder %s17, 2
      // Predicated region
      $region37: #{tpu_custom_call.1} parent=5 // pred_check
        %p255 = pneg %p254
      $region38: #{tpu_custom_call.1} parent=5 // pred_check_branch
        %257 = sbr.rel (%p255) target = $region40
      $region39: #{tpu_custom_call.1} parent=5 // pred_region
        // Predicated region
        $region41: #{tpu_custom_call.1} parent=39 // pred_check
          %p258 = pneg %p37
        $region42: #{tpu_custom_call.1} parent=39 // pred_check_branch
          %260 = sbr.rel (%p258) target = $region44
        $region43: #{tpu_custom_call.1} parent=39 // pred_region
          %p261 = scmp.lt.s32.totalorder %s17, 1
          %s262 = scalar_select %p261, %s17, 1
          %s263 = smul.addr %s262, 2
          %s264 = smul.addr %s263, 4
          %s265 = scalar_lea.vmem %s0, %s264
        $region44: #{tpu_custom_call.1} parent=39 // pred_fallthru
          _
        // Predicated region
        $region45: #{tpu_custom_call.1} parent=39 // pred_check
          %p266 = pneg %p63
        $region46: #{tpu_custom_call.1} parent=39 // pred_check_branch
          %268 = sbr.rel (%p266) target = $region48
        $region47: #{tpu_custom_call.1} parent=39 // pred_region
          %p269 = scmp.lt.s32.totalorder %s17, 1
          %s270 = scalar_select %p269, %s17, 1
          %s271 = smul.addr %s270, 4
          %s272 = scalar_lea.vmem %s1, %s271
        $region48: #{tpu_custom_call.1} parent=39 // pred_fallthru
          _
      $region40: #{tpu_custom_call.1} parent=5 // pred_fallthru
        _
      %p273 = scmp.le.s32.totalorder 1, %s17
      %p274 = scmp.lt.s32.totalorder %s17, 3
      %p275 = pnand %p273, %p274
      %p276 = pneg %p275
      // Predicated region
      $region49: #{tpu_custom_call.1} parent=5 // pred_check
        _
      $region50: #{tpu_custom_call.1} parent=5 // pred_check_branch
        %278 = sbr.rel (%p275) target = $region52
      $region51: #{tpu_custom_call.1} parent=5 // pred_region
        %s279 = ssub.s32 %s17, 1
        %p280 = scmp.lt.s32.totalorder %s22, 1
        %s281 = scalar_select %p280, %s22, 1
        %s282 = smul.addr %s281, 2
        %s283 = smul.addr %s282, 4
        %s284 = scalar_lea.vmem %s0, %s283
        %p285 = pneg %p43
        %p286 = pneg %p40
        %p287 = scmp.lt.s32.totalorder %s22, 1
        %s288 = scalar_select %p287, %s22, 1
        %s289 = smul.addr %s288, 4
        %s290 = scalar_lea.vmem %s1, %s289
        %p291 = pneg %p69
        %p292 = pneg %p66
        %p293 = pneg %p90
        %p294 = pneg %p87
        %p295 = pneg %p111
        %p296 = pneg %p108
        %p297 = pneg %p132
        %p298 = pneg %p129
        %p299 = pneg %p153
        %p300 = pneg %p150
        %p301 = pneg %p174
        %p302 = pneg %p171
        %p303 = pneg %p195
        %p304 = pneg %p192
        %p305 = pneg %p221
        %p306 = pneg %p218
        %s307 = sand.u32 %s208, 1
        %s308 = scalar_lea.sflag [#allocation3], %s307
        %s309 = sand.u32 %s208, 1
        %s310 = smul.addr %s309, 96
        %s311 = scalar_lea.vmem [#allocation2], %s310
        %p312 = scmp.lt.s32.totalorder %s22, 1
        %s313 = scalar_select %p312, %s22, 1
        %s314 = smul.addr %s313, 2
        %s315 = smul.addr %s314, 4
        %s316 = scalar_lea.vmem %s0, %s315
        %p317 = scmp.lt.s32.totalorder %s22, 1
        %s318 = scalar_select %p317, %s22, 1
        %s319 = smul.addr %s318, 4
        %s320 = scalar_lea.vmem %s1, %s319
        %v322 = vld [vmem:[%s316] sm:$0xff]
        %v323 = vld [vmem:[%s320] sm:$0xf]
        %325 = vset.pattern.permute.xlu0 0
        %326 = vperm.xlu0 %325, %v323
        %v327 = vpop.permute.xlu0 %326
        %v329 = vunpack.c.l.s4 839922192
        %v330 = vunpack.c.0.s8 %v329
        %v331 = vperm.slane %v327, %v330
        %v333 = vadd.f32 %v322, %v331
        %335 = vst [vmem:[#allocation1] ss:$2 sm:$0xff] %v333
        %v336 = vld.sshfl [vmem:[#allocation1] sm:$0xff pattern:$0x75316420]
        %v337 = vld.sshfl [vmem:[#allocation1 + $0x8] sm:$0xff pattern:$0x75316420]
        %vm340 = vcmask 1043456
        %v341 = vsel %vm340, %v336, 0.0
        %v342 = vsel %vm340, %v337, 0.0
        %v343 = vadd.f32 %v341, %v342
        %344 = vadd.xlane.f32.xlu0 %v343
        %v345 = vpop.xlane.xlu0 %344
        %v346 = vld [vmem:[%s2] sm:$0xf]
        %vm347 = vcmask 31744
        %v349 = vsel %vm347, %v346, 0
        %v352 = vsel %vm340, %v345, 0
        %354 = vmatpush.msra.mxu0 0.0
        %355 = vmatpush.msra.mxu0 0.0
        %356 = vmatpush.msra.mxu0 0.0
        %357 = vmatpush.msra.mxu0 0.0
        %358 = vmatpush.msra.mxu0 0.0
        %359 = vmatpush.msra.mxu0 0.0
        %360 = vmatpush.msra.mxu0 0.0
        %361 = vmatpush.msra.mxu0 0.0
        %362 = vmatpush.msra.mxu0 0.0
        %363 = vmatpush.msra.mxu0 0.0
        %364 = vmatpush.msra.mxu0 0.0
        %365 = vmatpush.msra.mxu0 0.0
        %366 = vmatpush.msra.mxu0 0.0
        %367 = vmatpush.msra.mxu0 0.0
        %368 = vmatpush.msra.mxu0 0.0
        %369 = vmatpush.msra.mxu0 %v352
        %370 = vmatmul.f32.gmra.mxu0 %v349
        %v371 = vpop.f32.mrf.mxu0
        %v372 = vadd.f32 0.0, %v371
        %373 = vdwg.mxu0
        %375 = vset.pattern.permute.xlu0 0
        %376 = vperm.xlu0 %375, %v372
        %v377 = vpop.permute.xlu0 %376
        %v379 = vunpack.c.l.s4 839922192
        %v380 = vunpack.c.0.s8 %v379
        %v381 = vperm.slane %v377, %v380
        %v383 = vsub.f32 %v333, %v381
        %v384 = vmul.f32 %v383, %v383
        %386 = vst [vmem:[#allocation1] ss:$2 sm:$0xff] %v384
        %v387 = vld.sshfl [vmem:[#allocation1] sm:$0xff pattern:$0x75316420]
        %v388 = vld.sshfl [vmem:[#allocation1 + $0x8] sm:$0xff pattern:$0x75316420]
        %v391 = vsel %vm340, %v387, 0.0
        %v392 = vsel %vm340, %v388, 0.0
        %v393 = vadd.f32 %v391, %v392
        %394 = vadd.xlane.f32.xlu0 %v393
        %v395 = vpop.xlane.xlu0 %394
        %v397 = vsel %vm340, %v395, 0
        %399 = vmatpush.msra.mxu0 0.0
        %400 = vmatpush.msra.mxu0 0.0
        %401 = vmatpush.msra.mxu0 0.0
        %402 = vmatpush.msra.mxu0 0.0
        %403 = vmatpush.msra.mxu0 0.0
        %404 = vmatpush.msra.mxu0 0.0
        %405 = vmatpush.msra.mxu0 0.0
        %406 = vmatpush.msra.mxu0 0.0
        %407 = vmatpush.msra.mxu0 0.0
        %408 = vmatpush.msra.mxu0 0.0
        %409 = vmatpush.msra.mxu0 0.0
        %410 = vmatpush.msra.mxu0 0.0
        %411 = vmatpush.msra.mxu0 0.0
        %412 = vmatpush.msra.mxu0 0.0
        %413 = vmatpush.msra.mxu0 0.0
        %414 = vmatpush.msra.mxu0 %v397
        %415 = vmatmul.f32.gmra.mxu0 %v349
        %v416 = vpop.f32.mrf.mxu0
        %v417 = vadd.f32 1e-05, %v416
        %418 = vdwg.mxu0
        %v419 = vrsqrt.pop %v417
        %v420 = vmul.f32 %v419, %v417
        %v421 = vmul.f32 %v420, %v419
        %v422 = vmul.f32 0.5, %v421
        %v423 = vsub.f32 1.5, %v422
        %v424 = vmul.f32 %v419, %v423
        %vm425 = vweird.f32 %v417
        %vm426 = vweird.f32 %v419
        %vm427 = vmor %vm425, %vm426
        %v428 = vsel %vm427, %v419, %v424
        %430 = vset.pattern.permute.xlu0 0
        %431 = vperm.xlu0 %430, %v428
        %v432 = vpop.permute.xlu0 %431
        %v434 = vunpack.c.l.s4 839922192
        %v435 = vunpack.c.0.s8 %v434
        %v436 = vperm.slane %v432, %v435
        %v438 = vmul.f32 %v383, %v436
        %v439 = vld [vmem:[%s3] sm:$0xf]
        %441 = vset.pattern.permute.xlu0 0
        %442 = vperm.xlu0 %441, %v439
        %v443 = vpop.permute.xlu0 %442
        %v445 = vunpack.c.l.s4 839922192
        %v446 = vunpack.c.0.s8 %v445
        %v447 = vperm.slane %v443, %v446
        %v449 = vmul.f32 %v438, %v447
        %v450 = vld [vmem:[%s4] sm:$0xf]
        %452 = vset.pattern.permute.xlu0 0
        %453 = vperm.xlu0 %452, %v450
        %v454 = vpop.permute.xlu0 %453
        %v456 = vunpack.c.l.s4 839922192
        %v457 = vunpack.c.0.s8 %v456
        %v458 = vperm.slane %v454, %v457
        %v460 = vadd.f32 %v449, %v458
        %v461 = vsub.f32 0.0, %v460
        %v462 = vmul.f32 %v461, 1.442695
        %v463 = vpow.pop %v462
        %v464 = vadd.f32 %v463, 1.0
        %v465 = vrcp.pop %v464
        %v466 = vmul.f32 %v460, %v465
        %468 = vst [vmem:[#allocation1] ss:$2 sm:$0xff] %v466
        %v469 = vld.sshfl [vmem:[#allocation1] sm:$0xff pattern:$0x75316420]
        %v470 = vld.sshfl [vmem:[#allocation1 + $0x8] sm:$0xff pattern:$0x75316420]
        %v473 = vpack.c.bf16 %v469, %v469
        %v474 = vpack.c.bf16 %v470, %v470
        %v475 = vld [vmem:[%s5] sm:$0xff]
        %v476 = vld [vmem:[%s5 + $0x8] sm:$0xf]
        %v477 = vld [vmem:[%s5 + $0xc] sm:$0xff]
        %v478 = vld [vmem:[%s5 + $0x14] sm:$0xf]
        %v479 = vld [vmem:[%s5 + $0x18] sm:$0xff]
        %v480 = vld [vmem:[%s5 + $0x20] sm:$0xf]
        %v481 = vld [vmem:[%s5 + $0x24] sm:$0xff]
        %v482 = vld [vmem:[%s5 + $0x2c] sm:$0xf]
        %v483 = vld [vmem:[%s5 + $0x30] sm:$0xff]
        %v484 = vld [vmem:[%s5 + $0x38] sm:$0xf]
        %v485 = vld [vmem:[%s5 + $0x3c] sm:$0xff]
        %v486 = vld [vmem:[%s5 + $0x44] sm:$0xf]
        %v487 = vld [vmem:[%s5 + $0x48] sm:$0xff]
        %v488 = vld [vmem:[%s5 + $0x50] sm:$0xf]
        %v489 = vld [vmem:[%s5 + $0x54] sm:$0xff]
        %v490 = vld [vmem:[%s5 + $0x5c] sm:$0xf]
        %v491 = vld [vmem:[%s5 + $0x60] sm:$0xff]
        %v492 = vld [vmem:[%s5 + $0x68] sm:$0xf]
        %v493 = vld [vmem:[%s5 + $0x6c] sm:$0xff]
        %v494 = vld [vmem:[%s5 + $0x74] sm:$0xf]
        %v495 = vld [vmem:[%s5 + $0x78] sm:$0xff]
        %v496 = vld [vmem:[%s5 + $0x80] sm:$0xf]
        %v497 = vld [vmem:[%s5 + $0x84] sm:$0xff]
        %v498 = vld [vmem:[%s5 + $0x8c] sm:$0xf]
        %v499 = vld [vmem:[%s5 + $0x90] sm:$0xff]
        %v500 = vld [vmem:[%s5 + $0x98] sm:$0xf]
        %v501 = vld [vmem:[%s5 + $0x9c] sm:$0xff]
        %v502 = vld [vmem:[%s5 + $0xa4] sm:$0xf]
        %v503 = vld [vmem:[%s5 + $0xa8] sm:$0xff]
        %v504 = vld [vmem:[%s5 + $0xb0] sm:$0xf]
        %v505 = vld [vmem:[%s5 + $0xb4] sm:$0xff]
        %v506 = vld [vmem:[%s5 + $0xbc] sm:$0xf]
        %v507 = vld [vmem:[%s5 + $0xc0] sm:$0xff]
        %v508 = vld [vmem:[%s5 + $0xc8] sm:$0xf]
        %v509 = vld [vmem:[%s5 + $0xcc] sm:$0xff]
        %v510 = vld [vmem:[%s5 + $0xd4] sm:$0xf]
        %v511 = vld [vmem:[%s5 + $0xd8] sm:$0xff]
        %v512 = vld [vmem:[%s5 + $0xe0] sm:$0xf]
        %v513 = vld [vmem:[%s5 + $0xe4] sm:$0xff]
        %v514 = vld [vmem:[%s5 + $0xec] sm:$0xf]
        %v515 = vld [vmem:[%s5 + $0xf0] sm:$0xff]
        %v516 = vld [vmem:[%s5 + $0xf8] sm:$0xf]
        %v517 = vld [vmem:[%s5 + $0xfc] sm:$0xff]
        %v518 = vld [vmem:[%s5 + $0x104] sm:$0xf]
        %v519 = vld [vmem:[%s5 + $0x108] sm:$0xff]
        %v520 = vld [vmem:[%s5 + $0x110] sm:$0xf]
        %v521 = vld [vmem:[%s5 + $0x114] sm:$0xff]
        %v522 = vld [vmem:[%s5 + $0x11c] sm:$0xf]
        %v523 = vld [vmem:[%s5 + $0x120] sm:$0xff]
        %v524 = vld [vmem:[%s5 + $0x128] sm:$0xf]
        %v525 = vld [vmem:[%s5 + $0x12c] sm:$0xff]
        %v526 = vld [vmem:[%s5 + $0x134] sm:$0xf]
        %v527 = vld [vmem:[%s5 + $0x138] sm:$0xff]
        %v528 = vld [vmem:[%s5 + $0x140] sm:$0xf]
        %v529 = vld [vmem:[%s5 + $0x144] sm:$0xff]
        %v530 = vld [vmem:[%s5 + $0x14c] sm:$0xf]
        %v531 = vld [vmem:[%s5 + $0x150] sm:$0xff]
        %v532 = vld [vmem:[%s5 + $0x158] sm:$0xf]
        %v533 = vld [vmem:[%s5 + $0x15c] sm:$0xff]
        %v534 = vld [vmem:[%s5 + $0x164] sm:$0xf]
        %v535 = vld [vmem:[%s5 + $0x168] sm:$0xff]
        %v536 = vld [vmem:[%s5 + $0x170] sm:$0xf]
        %v537 = vld [vmem:[%s5 + $0x174] sm:$0xff]
        %v538 = vld [vmem:[%s5 + $0x17c] sm:$0xf]
        %v603 = vunpack.c.l.b16 %v475
        %v604 = vunpack.c.h.b16 %v475
        %v605 = vunpack.c.l.b16 %v476
        %v606 = vunpack.c.l.b16 %v477
        %v607 = vunpack.c.h.b16 %v477
        %v608 = vunpack.c.l.b16 %v478
        %v609 = vunpack.c.l.b16 %v479
        %v610 = vunpack.c.h.b16 %v479
        %v611 = vunpack.c.l.b16 %v480
        %v612 = vunpack.c.l.b16 %v481
        %v613 = vunpack.c.h.b16 %v481
        %v614 = vunpack.c.l.b16 %v482
        %v615 = vunpack.c.l.b16 %v483
        %v616 = vunpack.c.h.b16 %v483
        %v617 = vunpack.c.l.b16 %v484
        %v618 = vunpack.c.l.b16 %v485
        %v619 = vunpack.c.h.b16 %v485
        %v620 = vunpack.c.l.b16 %v486
        %v621 = vunpack.c.l.b16 %v487
        %v622 = vunpack.c.h.b16 %v487
        %v623 = vunpack.c.l.b16 %v488
        %v624 = vunpack.c.l.b16 %v489
        %v625 = vunpack.c.h.b16 %v489
        %v626 = vunpack.c.l.b16 %v490
        %v627 = vunpack.c.l.b16 %v491
        %v628 = vunpack.c.h.b16 %v491
        %v629 = vunpack.c.l.b16 %v492
        %v630 = vunpack.c.l.b16 %v493
        %v631 = vunpack.c.h.b16 %v493
        %v632 = vunpack.c.l.b16 %v494
        %v633 = vunpack.c.l.b16 %v495
        %v634 = vunpack.c.h.b16 %v495
        %v635 = vunpack.c.l.b16 %v496
        %v636 = vunpack.c.l.b16 %v497
        %v637 = vunpack.c.h.b16 %v497
        %v638 = vunpack.c.l.b16 %v498
        %v639 = vunpack.c.l.b16 %v499
        %v640 = vunpack.c.h.b16 %v499
        %v641 = vunpack.c.l.b16 %v500
        %v642 = vunpack.c.l.b16 %v501
        %v643 = vunpack.c.h.b16 %v501
        %v644 = vunpack.c.l.b16 %v502
        %v645 = vunpack.c.l.b16 %v503
        %v646 = vunpack.c.h.b16 %v503
        %v647 = vunpack.c.l.b16 %v504
        %v648 = vunpack.c.l.b16 %v505
        %v649 = vunpack.c.h.b16 %v505
        %v650 = vunpack.c.l.b16 %v506
        %v651 = vunpack.c.l.b16 %v507
        %v652 = vunpack.c.h.b16 %v507
        %v653 = vunpack.c.l.b16 %v508
        %v654 = vunpack.c.l.b16 %v509
        %v655 = vunpack.c.h.b16 %v509
        %v656 = vunpack.c.l.b16 %v510
        %v657 = vunpack.c.l.b16 %v511
        %v658 = vunpack.c.h.b16 %v511
        %v659 = vunpack.c.l.b16 %v512
        %v660 = vunpack.c.l.b16 %v513
        %v661 = vunpack.c.h.b16 %v513
        %v662 = vunpack.c.l.b16 %v514
        %v663 = vunpack.c.l.b16 %v515
        %v664 = vunpack.c.h.b16 %v515
        %v665 = vunpack.c.l.b16 %v516
        %v666 = vunpack.c.l.b16 %v517
        %v667 = vunpack.c.h.b16 %v517
        %v668 = vunpack.c.l.b16 %v518
        %v669 = vunpack.c.l.b16 %v519
        %v670 = vunpack.c.h.b16 %v519
        %v671 = vunpack.c.l.b16 %v520
        %v672 = vunpack.c.l.b16 %v521
        %v673 = vunpack.c.h.b16 %v521
        %v674 = vunpack.c.l.b16 %v522
        %v675 = vunpack.c.l.b16 %v523
        %v676 = vunpack.c.h.b16 %v523
        %v677 = vunpack.c.l.b16 %v524
        %v678 = vunpack.c.l.b16 %v525
        %v679 = vunpack.c.h.b16 %v525
        %v680 = vunpack.c.l.b16 %v526
        %v681 = vunpack.c.l.b16 %v527
        %v682 = vunpack.c.h.b16 %v527
        %v683 = vunpack.c.l.b16 %v528
        %v684 = vunpack.c.l.b16 %v529
        %v685 = vunpack.c.h.b16 %v529
        %v686 = vunpack.c.l.b16 %v530
        %v687 = vunpack.c.l.b16 %v531
        %v688 = vunpack.c.h.b16 %v531
        %v689 = vunpack.c.l.b16 %v532
        %v690 = vunpack.c.l.b16 %v533
        %v691 = vunpack.c.h.b16 %v533
        %v692 = vunpack.c.l.b16 %v534
        %v693 = vunpack.c.l.b16 %v535
        %v694 = vunpack.c.h.b16 %v535
        %v695 = vunpack.c.l.b16 %v536
        %v696 = vunpack.c.l.b16 %v537
        %v697 = vunpack.c.h.b16 %v537
        %v698 = vunpack.c.l.b16 %v538
        %v699 = vpack.c.b16 %v606, %v603
        %v700 = vpack.c.b16 %v607, %v604
        %v701 = vpack.c.b16 %v608, %v605
        %v702 = vpack.c.b16 %v612, %v609
        %v703 = vpack.c.b16 %v613, %v610
        %v704 = vpack.c.b16 %v614, %v611
        %v705 = vpack.c.b16 %v618, %v615
        %v706 = vpack.c.b16 %v619, %v616
        %v707 = vpack.c.b16 %v620, %v617
        %v708 = vpack.c.b16 %v624, %v621
        %v709 = vpack.c.b16 %v625, %v622
        %v710 = vpack.c.b16 %v626, %v623
        %v711 = vpack.c.b16 %v630, %v627
        %v712 = vpack.c.b16 %v631, %v628
        %v713 = vpack.c.b16 %v632, %v629
        %v714 = vpack.c.b16 %v636, %v633
        %v715 = vpack.c.b16 %v637, %v634
        %v716 = vpack.c.b16 %v638, %v635
        %v717 = vpack.c.b16 %v642, %v639
        %v718 = vpack.c.b16 %v643, %v640
        %v719 = vpack.c.b16 %v644, %v641
        %v720 = vpack.c.b16 %v648, %v645
        %v721 = vpack.c.b16 %v649, %v646
        %v722 = vpack.c.b16 %v650, %v647
        %v723 = vpack.c.b16 %v654, %v651
        %v724 = vpack.c.b16 %v655, %v652
        %v725 = vpack.c.b16 %v656, %v653
        %v726 = vpack.c.b16 %v660, %v657
        %v727 = vpack.c.b16 %v661, %v658
        %v728 = vpack.c.b16 %v662, %v659
        %v729 = vpack.c.b16 %v666, %v663
        %v730 = vpack.c.b16 %v667, %v664
        %v731 = vpack.c.b16 %v668, %v665
        %v732 = vpack.c.b16 %v672, %v669
        %v733 = vpack.c.b16 %v673, %v670
        %v734 = vpack.c.b16 %v674, %v671
        %v735 = vpack.c.b16 %v678, %v675
        %v736 = vpack.c.b16 %v679, %v676
        %v737 = vpack.c.b16 %v680, %v677
        %v738 = vpack.c.b16 %v684, %v681
        %v739 = vpack.c.b16 %v685, %v682
        %v740 = vpack.c.b16 %v686, %v683
        %v741 = vpack.c.b16 %v690, %v687
        %v742 = vpack.c.b16 %v691, %v688
        %v743 = vpack.c.b16 %v692, %v689
        %v744 = vpack.c.b16 %v696, %v693
        %v745 = vpack.c.b16 %v697, %v694
        %v746 = vpack.c.b16 %v698, %v695
        %795 = vmatpush.bf16.msra.mxu0 %v720
        %796 = vmatpush.bf16.msra.mxu0 %v717
        %797 = vmatpush.bf16.msra.mxu0 %v714
        %798 = vmatpush.bf16.msra.mxu0 %v711
        %799 = vmatpush.bf16.msra.mxu0 %v708
        %800 = vmatpush.bf16.msra.mxu0 %v705
        %801 = vmatpush.bf16.msra.mxu0 %v702
        %802 = vmatpush.bf16.msra.mxu0 %v699
        %803 = vmatmul.bf16.gmra.mxu0 %v473
        %v804 = vpop.f32.mrf.mxu0
        %v805 = vadd.f32 0.0, %v804
        %v806 = vpop.f32.mrf.mxu0
        %807 = vdwg.mxu0
        %808 = vmatpush.bf16.msra.mxu0 %v744
        %809 = vmatpush.bf16.msra.mxu0 %v741
        %810 = vmatpush.bf16.msra.mxu0 %v738
        %811 = vmatpush.bf16.msra.mxu0 %v735
        %812 = vmatpush.bf16.msra.mxu0 %v732
        %813 = vmatpush.bf16.msra.mxu0 %v729
        %814 = vmatpush.bf16.msra.mxu0 %v726
        %815 = vmatpush.bf16.msra.mxu0 %v723
        %816 = vmatmul.bf16.gmra.mxu0 %v474
        %v817 = vpop.f32.mrf.mxu0
        %v818 = vadd.f32 %v805, %v817
        %v819 = vpop.f32.mrf.mxu0
        %820 = vdwg.mxu0
        %821 = vmatpush.bf16.msra.mxu0 %v721
        %822 = vmatpush.bf16.msra.mxu0 %v718
        %823 = vmatpush.bf16.msra.mxu0 %v715
        %824 = vmatpush.bf16.msra.mxu0 %v712
        %825 = vmatpush.bf16.msra.mxu0 %v709
        %826 = vmatpush.bf16.msra.mxu0 %v706
        %827 = vmatpush.bf16.msra.mxu0 %v703
        %828 = vmatpush.bf16.msra.mxu0 %v700
        %829 = vmatmul.bf16.gmra.mxu0 %v473
        %v830 = vpop.f32.mrf.mxu0
        %v831 = vadd.f32 0.0, %v830
        %v832 = vpop.f32.mrf.mxu0
        %833 = vdwg.mxu0
        %834 = vmatpush.bf16.msra.mxu0 %v745
        %835 = vmatpush.bf16.msra.mxu0 %v742
        %836 = vmatpush.bf16.msra.mxu0 %v739
        %837 = vmatpush.bf16.msra.mxu0 %v736
        %838 = vmatpush.bf16.msra.mxu0 %v733
        %839 = vmatpush.bf16.msra.mxu0 %v730
        %840 = vmatpush.bf16.msra.mxu0 %v727
        %841 = vmatpush.bf16.msra.mxu0 %v724
        %842 = vmatmul.bf16.gmra.mxu0 %v474
        %v843 = vpop.f32.mrf.mxu0
        %v844 = vadd.f32 %v831, %v843
        %v845 = vpop.f32.mrf.mxu0
        %846 = vdwg.mxu0
        %847 = vmatpush.bf16.msra.mxu0 %v722
        %848 = vmatpush.bf16.msra.mxu0 %v719
        %849 = vmatpush.bf16.msra.mxu0 %v716
        %850 = vmatpush.bf16.msra.mxu0 %v713
        %851 = vmatpush.bf16.msra.mxu0 %v710
        %852 = vmatpush.bf16.msra.mxu0 %v707
        %853 = vmatpush.bf16.msra.mxu0 %v704
        %854 = vmatpush.bf16.msra.mxu0 %v701
        %855 = vmatmul.bf16.gmra.mxu0 %v473
        %v856 = vpop.f32.mrf.mxu0
        %v857 = vadd.f32 0.0, %v856
        %v858 = vpop.f32.mrf.mxu0
        %859 = vdwg.mxu0
        %860 = vmatpush.bf16.msra.mxu0 %v746
        %861 = vmatpush.bf16.msra.mxu0 %v743
        %862 = vmatpush.bf16.msra.mxu0 %v740
        %863 = vmatpush.bf16.msra.mxu0 %v737
        %864 = vmatpush.bf16.msra.mxu0 %v734
        %865 = vmatpush.bf16.msra.mxu0 %v731
        %866 = vmatpush.bf16.msra.mxu0 %v728
        %867 = vmatpush.bf16.msra.mxu0 %v725
        %868 = vmatmul.bf16.gmra.mxu0 %v474
        %v869 = vpop.f32.mrf.mxu0
        %v870 = vadd.f32 %v857, %v869
        %v871 = vpop.f32.mrf.mxu0
        %872 = vdwg.mxu0
        %v873 = vpack.c.bf16 %v818, %v818
        %v874 = vpack.c.bf16 %v844, %v844
        %v875 = vpack.c.bf16 %v870, %v870
        %v876 = vld [vmem:[%s6] sm:$0xf]
        %v877 = vld [vmem:[%s6 + $0x4] sm:$0xf]
        %v878 = vld [vmem:[%s6 + $0x8] sm:$0xf]
        %v879 = vld [vmem:[%s6 + $0xc] sm:$0xf]
        %s880 = scalar_lea.vmem %s5, 384
        %v881 = vld [vmem:[%s880] sm:$0xff]
        %v882 = vld [vmem:[%s880 + $0x8] sm:$0xf]
        %v883 = vld [vmem:[%s880 + $0xc] sm:$0xff]
        %v884 = vld [vmem:[%s880 + $0x14] sm:$0xf]
        %v885 = vld [vmem:[%s880 + $0x18] sm:$0xff]
        %v886 = vld [vmem:[%s880 + $0x20] sm:$0xf]
        %v887 = vld [vmem:[%s880 + $0x24] sm:$0xff]
        %v888 = vld [vmem:[%s880 + $0x2c] sm:$0xf]
        %v889 = vld [vmem:[%s880 + $0x30] sm:$0xff]
        %v890 = vld [vmem:[%s880 + $0x38] sm:$0xf]
        %v891 = vld [vmem:[%s880 + $0x3c] sm:$0xff]
        %v892 = vld [vmem:[%s880 + $0x44] sm:$0xf]
        %v893 = vld [vmem:[%s880 + $0x48] sm:$0xff]
        %v894 = vld [vmem:[%s880 + $0x50] sm:$0xf]
        %v895 = vld [vmem:[%s880 + $0x54] sm:$0xff]
        %v896 = vld [vmem:[%s880 + $0x5c] sm:$0xf]
        %v897 = vld [vmem:[%s880 + $0x60] sm:$0xff]
        %v898 = vld [vmem:[%s880 + $0x68] sm:$0xf]
        %v899 = vld [vmem:[%s880 + $0x6c] sm:$0xff]
        %v900 = vld [vmem:[%s880 + $0x74] sm:$0xf]
        %v901 = vld [vmem:[%s880 + $0x78] sm:$0xff]
        %v902 = vld [vmem:[%s880 + $0x80] sm:$0xf]
        %v903 = vld [vmem:[%s880 + $0x84] sm:$0xff]
        %v904 = vld [vmem:[%s880 + $0x8c] sm:$0xf]
        %v905 = vld [vmem:[%s880 + $0x90] sm:$0xff]
        %v906 = vld [vmem:[%s880 + $0x98] sm:$0xf]
        %v907 = vld [vmem:[%s880 + $0x9c] sm:$0xff]
        %v908 = vld [vmem:[%s880 + $0xa4] sm:$0xf]
        %v909 = vld [vmem:[%s880 + $0xa8] sm:$0xff]
        %v910 = vld [vmem:[%s880 + $0xb0] sm:$0xf]
        %v911 = vld [vmem:[%s880 + $0xb4] sm:$0xff]
        %v912 = vld [vmem:[%s880 + $0xbc] sm:$0xf]
        %v913 = vld [vmem:[%s880 + $0xc0] sm:$0xff]
        %v914 = vld [vmem:[%s880 + $0xc8] sm:$0xf]
        %v915 = vld [vmem:[%s880 + $0xcc] sm:$0xff]
        %v916 = vld [vmem:[%s880 + $0xd4] sm:$0xf]
        %v917 = vld [vmem:[%s880 + $0xd8] sm:$0xff]
        %v918 = vld [vmem:[%s880 + $0xe0] sm:$0xf]
        %v919 = vld [vmem:[%s880 + $0xe4] sm:$0xff]
        %v920 = vld [vmem:[%s880 + $0xec] sm:$0xf]
        %v921 = vld [vmem:[%s880 + $0xf0] sm:$0xff]
        %v922 = vld [vmem:[%s880 + $0xf8] sm:$0xf]
        %v923 = vld [vmem:[%s880 + $0xfc] sm:$0xff]
        %v924 = vld [vmem:[%s880 + $0x104] sm:$0xf]
        %v925 = vld [vmem:[%s880 + $0x108] sm:$0xff]
        %v926 = vld [vmem:[%s880 + $0x110] sm:$0xf]
        %v927 = vld [vmem:[%s880 + $0x114] sm:$0xff]
        %v928 = vld [vmem:[%s880 + $0x11c] sm:$0xf]
        %v929 = vld [vmem:[%s880 + $0x120] sm:$0xff]
        %v930 = vld [vmem:[%s880 + $0x128] sm:$0xf]
        %v931 = vld [vmem:[%s880 + $0x12c] sm:$0xff]
        %v932 = vld [vmem:[%s880 + $0x134] sm:$0xf]
        %v933 = vld [vmem:[%s880 + $0x138] sm:$0xff]
        %v934 = vld [vmem:[%s880 + $0x140] sm:$0xf]
        %v935 = vld [vmem:[%s880 + $0x144] sm:$0xff]
        %v936 = vld [vmem:[%s880 + $0x14c] sm:$0xf]
        %v937 = vld [vmem:[%s880 + $0x150] sm:$0xff]
        %v938 = vld [vmem:[%s880 + $0x158] sm:$0xf]
        %v939 = vld [vmem:[%s880 + $0x15c] sm:$0xff]
        %v940 = vld [vmem:[%s880 + $0x164] sm:$0xf]
        %v941 = vld [vmem:[%s880 + $0x168] sm:$0xff]
        %v942 = vld [vmem:[%s880 + $0x170] sm:$0xf]
        %v943 = vld [vmem:[%s880 + $0x174] sm:$0xff]
        %v944 = vld [vmem:[%s880 + $0x17c] sm:$0xf]
        %v1009 = vunpack.c.l.b16 %v881
        %v1010 = vunpack.c.h.b16 %v881
        %v1011 = vunpack.c.l.b16 %v882
        %v1012 = vunpack.c.l.b16 %v883
        %v1013 = vunpack.c.h.b16 %v883
        %v1014 = vunpack.c.l.b16 %v884
        %v1015 = vunpack.c.l.b16 %v885
        %v1016 = vunpack.c.h.b16 %v885
        %v1017 = vunpack.c.l.b16 %v886
        %v1018 = vunpack.c.l.b16 %v887
        %v1019 = vunpack.c.h.b16 %v887
        %v1020 = vunpack.c.l.b16 %v888
        %v1021 = vunpack.c.l.b16 %v889
        %v1022 = vunpack.c.h.b16 %v889
        %v1023 = vunpack.c.l.b16 %v890
        %v1024 = vunpack.c.l.b16 %v891
        %v1025 = vunpack.c.h.b16 %v891
        %v1026 = vunpack.c.l.b16 %v892
        %v1027 = vunpack.c.l.b16 %v893
        %v1028 = vunpack.c.h.b16 %v893
        %v1029 = vunpack.c.l.b16 %v894
        %v1030 = vunpack.c.l.b16 %v895
        %v1031 = vunpack.c.h.b16 %v895
        %v1032 = vunpack.c.l.b16 %v896
        %v1033 = vunpack.c.l.b16 %v897
        %v1034 = vunpack.c.h.b16 %v897
        %v1035 = vunpack.c.l.b16 %v898
        %v1036 = vunpack.c.l.b16 %v899
        %v1037 = vunpack.c.h.b16 %v899
        %v1038 = vunpack.c.l.b16 %v900
        %v1039 = vunpack.c.l.b16 %v901
        %v1040 = vunpack.c.h.b16 %v901
        %v1041 = vunpack.c.l.b16 %v902
        %v1042 = vunpack.c.l.b16 %v903
        %v1043 = vunpack.c.h.b16 %v903
        %v1044 = vunpack.c.l.b16 %v904
        %v1045 = vunpack.c.l.b16 %v905
        %v1046 = vunpack.c.h.b16 %v905
        %v1047 = vunpack.c.l.b16 %v906
        %v1048 = vunpack.c.l.b16 %v907
        %v1049 = vunpack.c.h.b16 %v907
        %v1050 = vunpack.c.l.b16 %v908
        %v1051 = vunpack.c.l.b16 %v909
        %v1052 = vunpack.c.h.b16 %v909
        %v1053 = vunpack.c.l.b16 %v910
        %v1054 = vunpack.c.l.b16 %v911
        %v1055 = vunpack.c.h.b16 %v911
        %v1056 = vunpack.c.l.b16 %v912
        %v1057 = vunpack.c.l.b16 %v913
        %v1058 = vunpack.c.h.b16 %v913
        %v1059 = vunpack.c.l.b16 %v914
        %v1060 = vunpack.c.l.b16 %v915
        %v1061 = vunpack.c.h.b16 %v915
        %v1062 = vunpack.c.l.b16 %v916
        %v1063 = vunpack.c.l.b16 %v917
        %v1064 = vunpack.c.h.b16 %v917
        %v1065 = vunpack.c.l.b16 %v918
        %v1066 = vunpack.c.l.b16 %v919
        %v1067 = vunpack.c.h.b16 %v919
        %v1068 = vunpack.c.l.b16 %v920
        %v1069 = vunpack.c.l.b16 %v921
        %v1070 = vunpack.c.h.b16 %v921
        %v1071 = vunpack.c.l.b16 %v922
        %v1072 = vunpack.c.l.b16 %v923
        %v1073 = vunpack.c.h.b16 %v923
        %v1074 = vunpack.c.l.b16 %v924
        %v1075 = vunpack.c.l.b16 %v925
        %v1076 = vunpack.c.h.b16 %v925
        %v1077 = vunpack.c.l.b16 %v926
        %v1078 = vunpack.c.l.b16 %v927
        %v1079 = vunpack.c.h.b16 %v927
        %v1080 = vunpack.c.l.b16 %v928
        %v1081 = vunpack.c.l.b16 %v929
        %v1082 = vunpack.c.h.b16 %v929
        %v1083 = vunpack.c.l.b16 %v930
        %v1084 = vunpack.c.l.b16 %v931
        %v1085 = vunpack.c.h.b16 %v931
        %v1086 = vunpack.c.l.b16 %v932
        %v1087 = vunpack.c.l.b16 %v933
        %v1088 = vunpack.c.h.b16 %v933
        %v1089 = vunpack.c.l.b16 %v934
        %v1090 = vunpack.c.l.b16 %v935
        %v1091 = vunpack.c.h.b16 %v935
        %v1092 = vunpack.c.l.b16 %v936
        %v1093 = vunpack.c.l.b16 %v937
        %v1094 = vunpack.c.h.b16 %v937
        %v1095 = vunpack.c.l.b16 %v938
        %v1096 = vunpack.c.l.b16 %v939
        %v1097 = vunpack.c.h.b16 %v939
        %v1098 = vunpack.c.l.b16 %v940
        %v1099 = vunpack.c.l.b16 %v941
        %v1100 = vunpack.c.h.b16 %v941
        %v1101 = vunpack.c.l.b16 %v942
        %v1102 = vunpack.c.l.b16 %v943
        %v1103 = vunpack.c.h.b16 %v943
        %v1104 = vunpack.c.l.b16 %v944
        %v1105 = vpack.c.b16 %v1012, %v1009
        %v1106 = vpack.c.b16 %v1013, %v1010
        %v1107 = vpack.c.b16 %v1014, %v1011
        %v1108 = vpack.c.b16 %v1018, %v1015
        %v1109 = vpack.c.b16 %v1019, %v1016
        %v1110 = vpack.c.b16 %v1020, %v1017
        %v1111 = vpack.c.b16 %v1024, %v1021
        %v1112 = vpack.c.b16 %v1025, %v1022
        %v1113 = vpack.c.b16 %v1026, %v1023
        %v1114 = vpack.c.b16 %v1030, %v1027
        %v1115 = vpack.c.b16 %v1031, %v1028
        %v1116 = vpack.c.b16 %v1032, %v1029
        %v1117 = vpack.c.b16 %v1036, %v1033
        %v1118 = vpack.c.b16 %v1037, %v1034
        %v1119 = vpack.c.b16 %v1038, %v1035
        %v1120 = vpack.c.b16 %v1042, %v1039
        %v1121 = vpack.c.b16 %v1043, %v1040
        %v1122 = vpack.c.b16 %v1044, %v1041
        %v1123 = vpack.c.b16 %v1048, %v1045
        %v1124 = vpack.c.b16 %v1049, %v1046
        %v1125 = vpack.c.b16 %v1050, %v1047
        %v1126 = vpack.c.b16 %v1054, %v1051
        %v1127 = vpack.c.b16 %v1055, %v1052
        %v1128 = vpack.c.b16 %v1056, %v1053
        %v1129 = vpack.c.b16 %v1060, %v1057
        %v1130 = vpack.c.b16 %v1061, %v1058
        %v1131 = vpack.c.b16 %v1062, %v1059
        %v1132 = vpack.c.b16 %v1066, %v1063
        %v1133 = vpack.c.b16 %v1067, %v1064
        %v1134 = vpack.c.b16 %v1068, %v1065
        %v1135 = vpack.c.b16 %v1072, %v1069
        %v1136 = vpack.c.b16 %v1073, %v1070
        %v1137 = vpack.c.b16 %v1074, %v1071
        %v1138 = vpack.c.b16 %v1078, %v1075
        %v1139 = vpack.c.b16 %v1079, %v1076
        %v1140 = vpack.c.b16 %v1080, %v1077
        %v1141 = vpack.c.b16 %v1084, %v1081
        %v1142 = vpack.c.b16 %v1085, %v1082
        %v1143 = vpack.c.b16 %v1086, %v1083
        %v1144 = vpack.c.b16 %v1090, %v1087
        %v1145 = vpack.c.b16 %v1091, %v1088
        %v1146 = vpack.c.b16 %v1092, %v1089
        %v1147 = vpack.c.b16 %v1096, %v1093
        %v1148 = vpack.c.b16 %v1097, %v1094
        %v1149 = vpack.c.b16 %v1098, %v1095
        %v1150 = vpack.c.b16 %v1102, %v1099
        %v1151 = vpack.c.b16 %v1103, %v1100
        %v1152 = vpack.c.b16 %v1104, %v1101
        %1201 = vmatpush.bf16.msra.mxu0 %v1126
        %1202 = vmatpush.bf16.msra.mxu0 %v1123
        %1203 = vmatpush.bf16.msra.mxu0 %v1120
        %1204 = vmatpush.bf16.msra.mxu0 %v1117
        %1205 = vmatpush.bf16.msra.mxu0 %v1114
        %1206 = vmatpush.bf16.msra.mxu0 %v1111
        %1207 = vmatpush.bf16.msra.mxu0 %v1108
        %1208 = vmatpush.bf16.msra.mxu0 %v1105
        %1209 = vmatmul.bf16.gmra.mxu0 %v473
        %v1210 = vpop.f32.mrf.mxu0
        %v1211 = vadd.f32 0.0, %v1210
        %v1212 = vpop.f32.mrf.mxu0
        %1213 = vdwg.mxu0
        %1214 = vmatpush.bf16.msra.mxu0 %v1150
        %1215 = vmatpush.bf16.msra.mxu0 %v1147
        %1216 = vmatpush.bf16.msra.mxu0 %v1144
        %1217 = vmatpush.bf16.msra.mxu0 %v1141
        %1218 = vmatpush.bf16.msra.mxu0 %v1138
        %1219 = vmatpush.bf16.msra.mxu0 %v1135
        %1220 = vmatpush.bf16.msra.mxu0 %v1132
        %1221 = vmatpush.bf16.msra.mxu0 %v1129
        %1222 = vmatmul.bf16.gmra.mxu0 %v474
        %v1223 = vpop.f32.mrf.mxu0
        %v1224 = vadd.f32 %v1211, %v1223
        %v1225 = vpop.f32.mrf.mxu0
        %1226 = vdwg.mxu0
        %1227 = vmatpush.bf16.msra.mxu0 %v1127
        %1228 = vmatpush.bf16.msra.mxu0 %v1124
        %1229 = vmatpush.bf16.msra.mxu0 %v1121
        %1230 = vmatpush.bf16.msra.mxu0 %v1118
        %1231 = vmatpush.bf16.msra.mxu0 %v1115
        %1232 = vmatpush.bf16.msra.mxu0 %v1112
        %1233 = vmatpush.bf16.msra.mxu0 %v1109
        %1234 = vmatpush.bf16.msra.mxu0 %v1106
        %1235 = vmatmul.bf16.gmra.mxu0 %v473
        %v1236 = vpop.f32.mrf.mxu0
        %v1237 = vadd.f32 0.0, %v1236
        %v1238 = vpop.f32.mrf.mxu0
        %1239 = vdwg.mxu0
        %1240 = vmatpush.bf16.msra.mxu0 %v1151
        %1241 = vmatpush.bf16.msra.mxu0 %v1148
        %1242 = vmatpush.bf16.msra.mxu0 %v1145
        %1243 = vmatpush.bf16.msra.mxu0 %v1142
        %1244 = vmatpush.bf16.msra.mxu0 %v1139
        %1245 = vmatpush.bf16.msra.mxu0 %v1136
        %1246 = vmatpush.bf16.msra.mxu0 %v1133
        %1247 = vmatpush.bf16.msra.mxu0 %v1130
        %1248 = vmatmul.bf16.gmra.mxu0 %v474
        %v1249 = vpop.f32.mrf.mxu0
        %v1250 = vadd.f32 %v1237, %v1249
        %v1251 = vpop.f32.mrf.mxu0
        %1252 = vdwg.mxu0
        %1253 = vmatpush.bf16.msra.mxu0 %v1128
        %1254 = vmatpush.bf16.msra.mxu0 %v1125
        %1255 = vmatpush.bf16.msra.mxu0 %v1122
        %1256 = vmatpush.bf16.msra.mxu0 %v1119
        %1257 = vmatpush.bf16.msra.mxu0 %v1116
        %1258 = vmatpush.bf16.msra.mxu0 %v1113
        %1259 = vmatpush.bf16.msra.mxu0 %v1110
        %1260 = vmatpush.bf16.msra.mxu0 %v1107
        %1261 = vmatmul.bf16.gmra.mxu0 %v473
        %v1262 = vpop.f32.mrf.mxu0
        %v1263 = vadd.f32 0.0, %v1262
        %v1264 = vpop.f32.mrf.mxu0
        %1265 = vdwg.mxu0
        %1266 = vmatpush.bf16.msra.mxu0 %v1152
        %1267 = vmatpush.bf16.msra.mxu0 %v1149
        %1268 = vmatpush.bf16.msra.mxu0 %v1146
        %1269 = vmatpush.bf16.msra.mxu0 %v1143
        %1270 = vmatpush.bf16.msra.mxu0 %v1140
        %1271 = vmatpush.bf16.msra.mxu0 %v1137
        %1272 = vmatpush.bf16.msra.mxu0 %v1134
        %1273 = vmatpush.bf16.msra.mxu0 %v1131
        %1274 = vmatmul.bf16.gmra.mxu0 %v474
        %v1275 = vpop.f32.mrf.mxu0
        %v1276 = vadd.f32 %v1263, %v1275
        %v1277 = vpop.f32.mrf.mxu0
        %1278 = vdwg.mxu0
        %v1279 = vpack.c.bf16 %v1224, %v1224
        %v1280 = vpack.c.bf16 %v1250, %v1250
        %v1281 = vpack.c.bf16 %v1276, %v1276
        %s1282 = scalar_lea.vmem %s6, 16
        %v1283 = vld [vmem:[%s1282] sm:$0xf]
        %v1284 = vld [vmem:[%s1282 + $0x4] sm:$0xf]
        %v1285 = vld [vmem:[%s1282 + $0x8] sm:$0xf]
        %v1286 = vld [vmem:[%s1282 + $0xc] sm:$0xf]
        %v1291 = vunpack.c.l.b16 %v1283
        %v1292 = vunpack.c.l.b16 %v1284
        %v1293 = vunpack.c.l.b16 %v1285
        %v1294 = vunpack.c.l.b16 %v1286
        %v1295 = vpack.c.b16 %v1292, %v1291
        %v1296 = vpack.c.b16 %v1294, %v1293
        %v1298 = vsel %vm347, %v1295, 0
        %v1301 = vsel %vm347, %v1296, 0
        %vm1303 = vcmask 1041408
        %v1305 = vsel %vm1303, %v1279, 0
        %v1308 = vsel %vm1303, %v1280, 0
        %v1311 = vsel %vm1303, %v1281, 0
        %1313 = vmatpush.bf16.msra.mxu0 0
        %1314 = vmatpush.bf16.msra.mxu0 0
        %1315 = vmatpush.bf16.msra.mxu0 0
        %1316 = vmatpush.bf16.msra.mxu0 0
        %1317 = vmatpush.bf16.msra.mxu0 0
        %1318 = vmatpush.bf16.msra.mxu0 0
        %1319 = vmatpush.bf16.msra.mxu0 0
        %1320 = vmatpush.bf16.msra.mxu0 %v1305
        %1321 = vmatmul.bf16.gmra.mxu0 %v1298
        %v1322 = vpop.f32.mrf.mxu0
        %v1323 = vadd.f32 0.0, %v1322
        %v1324 = vpop.f32.mrf.mxu0
        %v1325 = vadd.f32 0.0, %v1324
        %1326 = vmatmul.bf16.gmra.mxu0 %v1301
        %v1327 = vpop.f32.mrf.mxu0
        %v1328 = vadd.f32 0.0, %v1327
        %v1329 = vpop.f32.mrf.mxu0
        %v1330 = vadd.f32 0.0, %v1329
        %1331 = vdwg.mxu0
        %1332 = vmatpush.bf16.msra.mxu0 0
        %1333 = vmatpush.bf16.msra.mxu0 0
        %1334 = vmatpush.bf16.msra.mxu0 0
        %1335 = vmatpush.bf16.msra.mxu0 0
        %1336 = vmatpush.bf16.msra.mxu0 0
        %1337 = vmatpush.bf16.msra.mxu0 0
        %1338 = vmatpush.bf16.msra.mxu0 0
        %1339 = vmatpush.bf16.msra.mxu0 %v1308
        %1340 = vmatmul.bf16.gmra.mxu0 %v1298
        %v1341 = vpop.f32.mrf.mxu0
        %v1342 = vadd.f32 0.0, %v1341
        %v1343 = vpop.f32.mrf.mxu0
        %v1344 = vadd.f32 0.0, %v1343
        %1345 = vmatmul.bf16.gmra.mxu0 %v1301
        %v1346 = vpop.f32.mrf.mxu0
        %v1347 = vadd.f32 0.0, %v1346
        %v1348 = vpop.f32.mrf.mxu0
        %v1349 = vadd.f32 0.0, %v1348
        %1350 = vdwg.mxu0
        %1351 = vmatpush.bf16.msra.mxu0 0
        %1352 = vmatpush.bf16.msra.mxu0 0
        %1353 = vmatpush.bf16.msra.mxu0 0
        %1354 = vmatpush.bf16.msra.mxu0 0
        %1355 = vmatpush.bf16.msra.mxu0 0
        %1356 = vmatpush.bf16.msra.mxu0 0
        %1357 = vmatpush.bf16.msra.mxu0 0
        %1358 = vmatpush.bf16.msra.mxu0 %v1311
        %1359 = vmatmul.bf16.gmra.mxu0 %v1298
        %v1360 = vpop.f32.mrf.mxu0
        %v1361 = vadd.f32 0.0, %v1360
        %v1362 = vpop.f32.mrf.mxu0
        %v1363 = vadd.f32 0.0, %v1362
        %1364 = vmatmul.bf16.gmra.mxu0 %v1301
        %v1365 = vpop.f32.mrf.mxu0
        %v1366 = vadd.f32 0.0, %v1365
        %v1367 = vpop.f32.mrf.mxu0
        %v1368 = vadd.f32 0.0, %v1367
        %1369 = vdwg.mxu0
        %v1374 = vunpack.c.l.b16 %v876
        %v1375 = vunpack.c.l.b16 %v877
        %v1376 = vunpack.c.l.b16 %v878
        %v1377 = vunpack.c.l.b16 %v879
        %v1378 = vpack.c.b16 %v1375, %v1374
        %v1379 = vpack.c.b16 %v1377, %v1376
        %v1381 = vsel %vm347, %v1378, 0
        %v1384 = vsel %vm347, %v1379, 0
        %v1387 = vsel %vm1303, %v873, 0
        %v1390 = vsel %vm1303, %v874, 0
        %v1393 = vsel %vm1303, %v875, 0
        %1395 = vmatpush.bf16.msra.mxu0 0
        %1396 = vmatpush.bf16.msra.mxu0 0
        %1397 = vmatpush.bf16.msra.mxu0 0
        %1398 = vmatpush.bf16.msra.mxu0 0
        %1399 = vmatpush.bf16.msra.mxu0 0
        %1400 = vmatpush.bf16.msra.mxu0 0
        %1401 = vmatpush.bf16.msra.mxu0 0
        %1402 = vmatpush.bf16.msra.mxu0 %v1387
        %1403 = vmatmul.bf16.gmra.mxu0 %v1381
        %v1404 = vpop.f32.mrf.mxu0
        %v1405 = vadd.f32 %v1323, %v1404
        %v1406 = vpop.f32.mrf.mxu0
        %v1407 = vadd.f32 %v1325, %v1406
        %1408 = vmatmul.bf16.gmra.mxu0 %v1384
        %v1409 = vpop.f32.mrf.mxu0
        %v1410 = vadd.f32 %v1328, %v1409
        %v1411 = vpop.f32.mrf.mxu0
        %v1412 = vadd.f32 %v1330, %v1411
        %1413 = vdwg.mxu0
        %1414 = vmatpush.bf16.msra.mxu0 0
        %1415 = vmatpush.bf16.msra.mxu0 0
        %1416 = vmatpush.bf16.msra.mxu0 0
        %1417 = vmatpush.bf16.msra.mxu0 0
        %1418 = vmatpush.bf16.msra.mxu0 0
        %1419 = vmatpush.bf16.msra.mxu0 0
        %1420 = vmatpush.bf16.msra.mxu0 0
        %1421 = vmatpush.bf16.msra.mxu0 %v1390
        %1422 = vmatmul.bf16.gmra.mxu0 %v1381
        %v1423 = vpop.f32.mrf.mxu0
        %v1424 = vadd.f32 %v1342, %v1423
        %v1425 = vpop.f32.mrf.mxu0
        %v1426 = vadd.f32 %v1344, %v1425
        %1427 = vmatmul.bf16.gmra.mxu0 %v1384
        %v1428 = vpop.f32.mrf.mxu0
        %v1429 = vadd.f32 %v1347, %v1428
        %v1430 = vpop.f32.mrf.mxu0
        %v1431 = vadd.f32 %v1349, %v1430
        %1432 = vdwg.mxu0
        %1433 = vmatpush.bf16.msra.mxu0 0
        %1434 = vmatpush.bf16.msra.mxu0 0
        %1435 = vmatpush.bf16.msra.mxu0 0
        %1436 = vmatpush.bf16.msra.mxu0 0
        %1437 = vmatpush.bf16.msra.mxu0 0
        %1438 = vmatpush.bf16.msra.mxu0 0
        %1439 = vmatpush.bf16.msra.mxu0 0
        %1440 = vmatpush.bf16.msra.mxu0 %v1393
        %1441 = vmatmul.bf16.gmra.mxu0 %v1381
        %v1442 = vpop.f32.mrf.mxu0
        %v1443 = vadd.f32 %v1361, %v1442
        %v1444 = vpop.f32.mrf.mxu0
        %v1445 = vadd.f32 %v1363, %v1444
        %1446 = vmatmul.bf16.gmra.mxu0 %v1384
        %v1447 = vpop.f32.mrf.mxu0
        %v1448 = vadd.f32 %v1366, %v1447
        %v1449 = vpop.f32.mrf.mxu0
        %v1450 = vadd.f32 %v1368, %v1449
        %1451 = vdwg.mxu0
        %s1452 = scalar_lea.vmem %s5, 768
        %v1453 = vld [vmem:[%s1452] sm:$0xff]
        %v1454 = vld [vmem:[%s1452 + $0x8] sm:$0xf]
        %v1455 = vld [vmem:[%s1452 + $0xc] sm:$0xff]
        %v1456 = vld [vmem:[%s1452 + $0x14] sm:$0xf]
        %v1457 = vld [vmem:[%s1452 + $0x18] sm:$0xff]
        %v1458 = vld [vmem:[%s1452 + $0x20] sm:$0xf]
        %v1459 = vld [vmem:[%s1452 + $0x24] sm:$0xff]
        %v1460 = vld [vmem:[%s1452 + $0x2c] sm:$0xf]
        %v1461 = vld [vmem:[%s1452 + $0x30] sm:$0xff]
        %v1462 = vld [vmem:[%s1452 + $0x38] sm:$0xf]
        %v1463 = vld [vmem:[%s1452 + $0x3c] sm:$0xff]
        %v1464 = vld [vmem:[%s1452 + $0x44] sm:$0xf]
        %v1465 = vld [vmem:[%s1452 + $0x48] sm:$0xff]
        %v1466 = vld [vmem:[%s1452 + $0x50] sm:$0xf]
        %v1467 = vld [vmem:[%s1452 + $0x54] sm:$0xff]
        %v1468 = vld [vmem:[%s1452 + $0x5c] sm:$0xf]
        %v1469 = vld [vmem:[%s1452 + $0x60] sm:$0xff]
        %v1470 = vld [vmem:[%s1452 + $0x68] sm:$0xf]
        %v1471 = vld [vmem:[%s1452 + $0x6c] sm:$0xff]
        %v1472 = vld [vmem:[%s1452 + $0x74] sm:$0xf]
        %v1473 = vld [vmem:[%s1452 + $0x78] sm:$0xff]
        %v1474 = vld [vmem:[%s1452 + $0x80] sm:$0xf]
        %v1475 = vld [vmem:[%s1452 + $0x84] sm:$0xff]
        %v1476 = vld [vmem:[%s1452 + $0x8c] sm:$0xf]
        %v1477 = vld [vmem:[%s1452 + $0x90] sm:$0xff]
        %v1478 = vld [vmem:[%s1452 + $0x98] sm:$0xf]
        %v1479 = vld [vmem:[%s1452 + $0x9c] sm:$0xff]
        %v1480 = vld [vmem:[%s1452 + $0xa4] sm:$0xf]
        %v1481 = vld [vmem:[%s1452 + $0xa8] sm:$0xff]
        %v1482 = vld [vmem:[%s1452 + $0xb0] sm:$0xf]
        %v1483 = vld [vmem:[%s1452 + $0xb4] sm:$0xff]
        %v1484 = vld [vmem:[%s1452 + $0xbc] sm:$0xf]
        %v1485 = vld [vmem:[%s1452 + $0xc0] sm:$0xff]
        %v1486 = vld [vmem:[%s1452 + $0xc8] sm:$0xf]
        %v1487 = vld [vmem:[%s1452 + $0xcc] sm:$0xff]
        %v1488 = vld [vmem:[%s1452 + $0xd4] sm:$0xf]
        %v1489 = vld [vmem:[%s1452 + $0xd8] sm:$0xff]
        %v1490 = vld [vmem:[%s1452 + $0xe0] sm:$0xf]
        %v1491 = vld [vmem:[%s1452 + $0xe4] sm:$0xff]
        %v1492 = vld [vmem:[%s1452 + $0xec] sm:$0xf]
        %v1493 = vld [vmem:[%s1452 + $0xf0] sm:$0xff]
        %v1494 = vld [vmem:[%s1452 + $0xf8] sm:$0xf]
        %v1495 = vld [vmem:[%s1452 + $0xfc] sm:$0xff]
        %v1496 = vld [vmem:[%s1452 + $0x104] sm:$0xf]
        %v1497 = vld [vmem:[%s1452 + $0x108] sm:$0xff]
        %v1498 = vld [vmem:[%s1452 + $0x110] sm:$0xf]
        %v1499 = vld [vmem:[%s1452 + $0x114] sm:$0xff]
        %v1500 = vld [vmem:[%s1452 + $0x11c] sm:$0xf]
        %v1501 = vld [vmem:[%s1452 + $0x120] sm:$0xff]
        %v1502 = vld [vmem:[%s1452 + $0x128] sm:$0xf]
        %v1503 = vld [vmem:[%s1452 + $0x12c] sm:$0xff]
        %v1504 = vld [vmem:[%s1452 + $0x134] sm:$0xf]
        %v1505 = vld [vmem:[%s1452 + $0x138] sm:$0xff]
        %v1506 = vld [vmem:[%s1452 + $0x140] sm:$0xf]
        %v1507 = vld [vmem:[%s1452 + $0x144] sm:$0xff]
        %v1508 = vld [vmem:[%s1452 + $0x14c] sm:$0xf]
        %v1509 = vld [vmem:[%s1452 + $0x150] sm:$0xff]
        %v1510 = vld [vmem:[%s1452 + $0x158] sm:$0xf]
        %v1511 = vld [vmem:[%s1452 + $0x15c] sm:$0xff]
        %v1512 = vld [vmem:[%s1452 + $0x164] sm:$0xf]
        %v1513 = vld [vmem:[%s1452 + $0x168] sm:$0xff]
        %v1514 = vld [vmem:[%s1452 + $0x170] sm:$0xf]
        %v1515 = vld [vmem:[%s1452 + $0x174] sm:$0xff]
        %v1516 = vld [vmem:[%s1452 + $0x17c] sm:$0xf]
        %v1581 = vunpack.c.l.b16 %v1453
        %v1582 = vunpack.c.h.b16 %v1453
        %v1583 = vunpack.c.l.b16 %v1454
        %v1584 = vunpack.c.l.b16 %v1455
        %v1585 = vunpack.c.h.b16 %v1455
        %v1586 = vunpack.c.l.b16 %v1456
        %v1587 = vunpack.c.l.b16 %v1457
        %v1588 = vunpack.c.h.b16 %v1457
        %v1589 = vunpack.c.l.b16 %v1458
        %v1590 = vunpack.c.l.b16 %v1459
        %v1591 = vunpack.c.h.b16 %v1459
        %v1592 = vunpack.c.l.b16 %v1460
        %v1593 = vunpack.c.l.b16 %v1461
        %v1594 = vunpack.c.h.b16 %v1461
        %v1595 = vunpack.c.l.b16 %v1462
        %v1596 = vunpack.c.l.b16 %v1463
        %v1597 = vunpack.c.h.b16 %v1463
        %v1598 = vunpack.c.l.b16 %v1464
        %v1599 = vunpack.c.l.b16 %v1465
        %v1600 = vunpack.c.h.b16 %v1465
        %v1601 = vunpack.c.l.b16 %v1466
        %v1602 = vunpack.c.l.b16 %v1467
        %v1603 = vunpack.c.h.b16 %v1467
        %v1604 = vunpack.c.l.b16 %v1468
        %v1605 = vunpack.c.l.b16 %v1469
        %v1606 = vunpack.c.h.b16 %v1469
        %v1607 = vunpack.c.l.b16 %v1470
        %v1608 = vunpack.c.l.b16 %v1471
        %v1609 = vunpack.c.h.b16 %v1471
        %v1610 = vunpack.c.l.b16 %v1472
        %v1611 = vunpack.c.l.b16 %v1473
        %v1612 = vunpack.c.h.b16 %v1473
        %v1613 = vunpack.c.l.b16 %v1474
        %v1614 = vunpack.c.l.b16 %v1475
        %v1615 = vunpack.c.h.b16 %v1475
        %v1616 = vunpack.c.l.b16 %v1476
        %v1617 = vunpack.c.l.b16 %v1477
        %v1618 = vunpack.c.h.b16 %v1477
        %v1619 = vunpack.c.l.b16 %v1478
        %v1620 = vunpack.c.l.b16 %v1479
        %v1621 = vunpack.c.h.b16 %v1479
        %v1622 = vunpack.c.l.b16 %v1480
        %v1623 = vunpack.c.l.b16 %v1481
        %v1624 = vunpack.c.h.b16 %v1481
        %v1625 = vunpack.c.l.b16 %v1482
        %v1626 = vunpack.c.l.b16 %v1483
        %v1627 = vunpack.c.h.b16 %v1483
        %v1628 = vunpack.c.l.b16 %v1484
        %v1629 = vunpack.c.l.b16 %v1485
        %v1630 = vunpack.c.h.b16 %v1485
        %v1631 = vunpack.c.l.b16 %v1486
        %v1632 = vunpack.c.l.b16 %v1487
        %v1633 = vunpack.c.h.b16 %v1487
        %v1634 = vunpack.c.l.b16 %v1488
        %v1635 = vunpack.c.l.b16 %v1489
        %v1636 = vunpack.c.h.b16 %v1489
        %v1637 = vunpack.c.l.b16 %v1490
        %v1638 = vunpack.c.l.b16 %v1491
        %v1639 = vunpack.c.h.b16 %v1491
        %v1640 = vunpack.c.l.b16 %v1492
        %v1641 = vunpack.c.l.b16 %v1493
        %v1642 = vunpack.c.h.b16 %v1493
        %v1643 = vunpack.c.l.b16 %v1494
        %v1644 = vunpack.c.l.b16 %v1495
        %v1645 = vunpack.c.h.b16 %v1495
        %v1646 = vunpack.c.l.b16 %v1496
        %v1647 = vunpack.c.l.b16 %v1497
        %v1648 = vunpack.c.h.b16 %v1497
        %v1649 = vunpack.c.l.b16 %v1498
        %v1650 = vunpack.c.l.b16 %v1499
        %v1651 = vunpack.c.h.b16 %v1499
        %v1652 = vunpack.c.l.b16 %v1500
        %v1653 = vunpack.c.l.b16 %v1501
        %v1654 = vunpack.c.h.b16 %v1501
        %v1655 = vunpack.c.l.b16 %v1502
        %v1656 = vunpack.c.l.b16 %v1503
        %v1657 = vunpack.c.h.b16 %v1503
        %v1658 = vunpack.c.l.b16 %v1504
        %v1659 = vunpack.c.l.b16 %v1505
        %v1660 = vunpack.c.h.b16 %v1505
        %v1661 = vunpack.c.l.b16 %v1506
        %v1662 = vunpack.c.l.b16 %v1507
        %v1663 = vunpack.c.h.b16 %v1507
        %v1664 = vunpack.c.l.b16 %v1508
        %v1665 = vunpack.c.l.b16 %v1509
        %v1666 = vunpack.c.h.b16 %v1509
        %v1667 = vunpack.c.l.b16 %v1510
        %v1668 = vunpack.c.l.b16 %v1511
        %v1669 = vunpack.c.h.b16 %v1511
        %v1670 = vunpack.c.l.b16 %v1512
        %v1671 = vunpack.c.l.b16 %v1513
        %v1672 = vunpack.c.h.b16 %v1513
        %v1673 = vunpack.c.l.b16 %v1514
        %v1674 = vunpack.c.l.b16 %v1515
        %v1675 = vunpack.c.h.b16 %v1515
        %v1676 = vunpack.c.l.b16 %v1516
        %v1677 = vpack.c.b16 %v1584, %v1581
        %v1678 = vpack.c.b16 %v1585, %v1582
        %v1679 = vpack.c.b16 %v1586, %v1583
        %v1680 = vpack.c.b16 %v1590, %v1587
        %v1681 = vpack.c.b16 %v1591, %v1588
        %v1682 = vpack.c.b16 %v1592, %v1589
        %v1683 = vpack.c.b16 %v1596, %v1593
        %v1684 = vpack.c.b16 %v1597, %v1594
        %v1685 = vpack.c.b16 %v1598, %v1595
        %v1686 = vpack.c.b16 %v1602, %v1599
        %v1687 = vpack.c.b16 %v1603, %v1600
        %v1688 = vpack.c.b16 %v1604, %v1601
        %v1689 = vpack.c.b16 %v1608, %v1605
        %v1690 = vpack.c.b16 %v1609, %v1606
        %v1691 = vpack.c.b16 %v1610, %v1607
        %v1692 = vpack.c.b16 %v1614, %v1611
        %v1693 = vpack.c.b16 %v1615, %v1612
        %v1694 = vpack.c.b16 %v1616, %v1613
        %v1695 = vpack.c.b16 %v1620, %v1617
        %v1696 = vpack.c.b16 %v1621, %v1618
        %v1697 = vpack.c.b16 %v1622, %v1619
        %v1698 = vpack.c.b16 %v1626, %v1623
        %v1699 = vpack.c.b16 %v1627, %v1624
        %v1700 = vpack.c.b16 %v1628, %v1625
        %v1701 = vpack.c.b16 %v1632, %v1629
        %v1702 = vpack.c.b16 %v1633, %v1630
        %v1703 = vpack.c.b16 %v1634, %v1631
        %v1704 = vpack.c.b16 %v1638, %v1635
        %v1705 = vpack.c.b16 %v1639, %v1636
        %v1706 = vpack.c.b16 %v1640, %v1637
        %v1707 = vpack.c.b16 %v1644, %v1641
        %v1708 = vpack.c.b16 %v1645, %v1642
        %v1709 = vpack.c.b16 %v1646, %v1643
        %v1710 = vpack.c.b16 %v1650, %v1647
        %v1711 = vpack.c.b16 %v1651, %v1648
        %v1712 = vpack.c.b16 %v1652, %v1649
        %v1713 = vpack.c.b16 %v1656, %v1653
        %v1714 = vpack.c.b16 %v1657, %v1654
        %v1715 = vpack.c.b16 %v1658, %v1655
        %v1716 = vpack.c.b16 %v1662, %v1659
        %v1717 = vpack.c.b16 %v1663, %v1660
        %v1718 = vpack.c.b16 %v1664, %v1661
        %v1719 = vpack.c.b16 %v1668, %v1665
        %v1720 = vpack.c.b16 %v1669, %v1666
        %v1721 = vpack.c.b16 %v1670, %v1667
        %v1722 = vpack.c.b16 %v1674, %v1671
        %v1723 = vpack.c.b16 %v1675, %v1672
        %v1724 = vpack.c.b16 %v1676, %v1673
        %1773 = vmatpush.bf16.msra.mxu0 %v1698
        %1774 = vmatpush.bf16.msra.mxu0 %v1695
        %1775 = vmatpush.bf16.msra.mxu0 %v1692
        %1776 = vmatpush.bf16.msra.mxu0 %v1689
        %1777 = vmatpush.bf16.msra.mxu0 %v1686
        %1778 = vmatpush.bf16.msra.mxu0 %v1683
        %1779 = vmatpush.bf16.msra.mxu0 %v1680
        %1780 = vmatpush.bf16.msra.mxu0 %v1677
        %1781 = vmatmul.bf16.gmra.mxu0 %v473
        %v1782 = vpop.f32.mrf.mxu0
        %v1783 = vadd.f32 0.0, %v1782
        %v1784 = vpop.f32.mrf.mxu0
        %1785 = vdwg.mxu0
        %1786 = vmatpush.bf16.msra.mxu0 %v1722
        %1787 = vmatpush.bf16.msra.mxu0 %v1719
        %1788 = vmatpush.bf16.msra.mxu0 %v1716
        %1789 = vmatpush.bf16.msra.mxu0 %v1713
        %1790 = vmatpush.bf16.msra.mxu0 %v1710
        %1791 = vmatpush.bf16.msra.mxu0 %v1707
        %1792 = vmatpush.bf16.msra.mxu0 %v1704
        %1793 = vmatpush.bf16.msra.mxu0 %v1701
        %1794 = vmatmul.bf16.gmra.mxu0 %v474
        %v1795 = vpop.f32.mrf.mxu0
        %v1796 = vadd.f32 %v1783, %v1795
        %v1797 = vpop.f32.mrf.mxu0
        %1798 = vdwg.mxu0
        %1799 = vmatpush.bf16.msra.mxu0 %v1699
        %1800 = vmatpush.bf16.msra.mxu0 %v1696
        %1801 = vmatpush.bf16.msra.mxu0 %v1693
        %1802 = vmatpush.bf16.msra.mxu0 %v1690
        %1803 = vmatpush.bf16.msra.mxu0 %v1687
        %1804 = vmatpush.bf16.msra.mxu0 %v1684
        %1805 = vmatpush.bf16.msra.mxu0 %v1681
        %1806 = vmatpush.bf16.msra.mxu0 %v1678
        %1807 = vmatmul.bf16.gmra.mxu0 %v473
        %v1808 = vpop.f32.mrf.mxu0
        %v1809 = vadd.f32 0.0, %v1808
        %v1810 = vpop.f32.mrf.mxu0
        %1811 = vdwg.mxu0
        %1812 = vmatpush.bf16.msra.mxu0 %v1723
        %1813 = vmatpush.bf16.msra.mxu0 %v1720
        %1814 = vmatpush.bf16.msra.mxu0 %v1717
        %1815 = vmatpush.bf16.msra.mxu0 %v1714
        %1816 = vmatpush.bf16.msra.mxu0 %v1711
        %1817 = vmatpush.bf16.msra.mxu0 %v1708
        %1818 = vmatpush.bf16.msra.mxu0 %v1705
        %1819 = vmatpush.bf16.msra.mxu0 %v1702
        %1820 = vmatmul.bf16.gmra.mxu0 %v474
        %v1821 = vpop.f32.mrf.mxu0
        %v1822 = vadd.f32 %v1809, %v1821
        %v1823 = vpop.f32.mrf.mxu0
        %1824 = vdwg.mxu0
        %1825 = vmatpush.bf16.msra.mxu0 %v1700
        %1826 = vmatpush.bf16.msra.mxu0 %v1697
        %1827 = vmatpush.bf16.msra.mxu0 %v1694
        %1828 = vmatpush.bf16.msra.mxu0 %v1691
        %1829 = vmatpush.bf16.msra.mxu0 %v1688
        %1830 = vmatpush.bf16.msra.mxu0 %v1685
        %1831 = vmatpush.bf16.msra.mxu0 %v1682
        %1832 = vmatpush.bf16.msra.mxu0 %v1679
        %1833 = vmatmul.bf16.gmra.mxu0 %v473
        %v1834 = vpop.f32.mrf.mxu0
        %v1835 = vadd.f32 0.0, %v1834
        %v1836 = vpop.f32.mrf.mxu0
        %1837 = vdwg.mxu0
        %1838 = vmatpush.bf16.msra.mxu0 %v1724
        %1839 = vmatpush.bf16.msra.mxu0 %v1721
        %1840 = vmatpush.bf16.msra.mxu0 %v1718
        %1841 = vmatpush.bf16.msra.mxu0 %v1715
        %1842 = vmatpush.bf16.msra.mxu0 %v1712
        %1843 = vmatpush.bf16.msra.mxu0 %v1709
        %1844 = vmatpush.bf16.msra.mxu0 %v1706
        %1845 = vmatpush.bf16.msra.mxu0 %v1703
        %1846 = vmatmul.bf16.gmra.mxu0 %v474
        %v1847 = vpop.f32.mrf.mxu0
        %v1848 = vadd.f32 %v1835, %v1847
        %v1849 = vpop.f32.mrf.mxu0
        %1850 = vdwg.mxu0
        %v1851 = vpack.c.bf16 %v1796, %v1796
        %v1852 = vpack.c.bf16 %v1822, %v1822
        %v1853 = vpack.c.bf16 %v1848, %v1848
        %s1854 = scalar_lea.vmem %s6, 32
        %v1855 = vld [vmem:[%s1854] sm:$0xf]
        %v1856 = vld [vmem:[%s1854 + $0x4] sm:$0xf]
        %v1857 = vld [vmem:[%s1854 + $0x8] sm:$0xf]
        %v1858 = vld [vmem:[%s1854 + $0xc] sm:$0xf]
        %v1863 = vunpack.c.l.b16 %v1855
        %v1864 = vunpack.c.l.b16 %v1856
        %v1865 = vunpack.c.l.b16 %v1857
        %v1866 = vunpack.c.l.b16 %v1858
        %v1867 = vpack.c.b16 %v1864, %v1863
        %v1868 = vpack.c.b16 %v1866, %v1865
        %v1870 = vsel %vm347, %v1867, 0
        %v1873 = vsel %vm347, %v1868, 0
        %v1876 = vsel %vm1303, %v1851, 0
        %v1879 = vsel %vm1303, %v1852, 0
        %v1882 = vsel %vm1303, %v1853, 0
        %1884 = vmatpush.bf16.msra.mxu0 0
        %1885 = vmatpush.bf16.msra.mxu0 0
        %1886 = vmatpush.bf16.msra.mxu0 0
        %1887 = vmatpush.bf16.msra.mxu0 0
        %1888 = vmatpush.bf16.msra.mxu0 0
        %1889 = vmatpush.bf16.msra.mxu0 0
        %1890 = vmatpush.bf16.msra.mxu0 0
        %1891 = vmatpush.bf16.msra.mxu0 %v1876
        %1892 = vmatmul.bf16.gmra.mxu0 %v1870
        %v1893 = vpop.f32.mrf.mxu0
        %v1894 = vadd.f32 0.0, %v1893
        %v1895 = vpop.f32.mrf.mxu0
        %v1896 = vadd.f32 0.0, %v1895
        %1897 = vmatmul.bf16.gmra.mxu0 %v1873
        %v1898 = vpop.f32.mrf.mxu0
        %v1899 = vadd.f32 0.0, %v1898
        %v1900 = vpop.f32.mrf.mxu0
        %v1901 = vadd.f32 0.0, %v1900
        %1902 = vdwg.mxu0
        %1903 = vmatpush.bf16.msra.mxu0 0
        %1904 = vmatpush.bf16.msra.mxu0 0
        %1905 = vmatpush.bf16.msra.mxu0 0
        %1906 = vmatpush.bf16.msra.mxu0 0
        %1907 = vmatpush.bf16.msra.mxu0 0
        %1908 = vmatpush.bf16.msra.mxu0 0
        %1909 = vmatpush.bf16.msra.mxu0 0
        %1910 = vmatpush.bf16.msra.mxu0 %v1879
        %1911 = vmatmul.bf16.gmra.mxu0 %v1870
        %v1912 = vpop.f32.mrf.mxu0
        %v1913 = vadd.f32 0.0, %v1912
        %v1914 = vpop.f32.mrf.mxu0
        %v1915 = vadd.f32 0.0, %v1914
        %1916 = vmatmul.bf16.gmra.mxu0 %v1873
        %v1917 = vpop.f32.mrf.mxu0
        %v1918 = vadd.f32 0.0, %v1917
        %v1919 = vpop.f32.mrf.mxu0
        %v1920 = vadd.f32 0.0, %v1919
        %1921 = vdwg.mxu0
        %1922 = vmatpush.bf16.msra.mxu0 0
        %1923 = vmatpush.bf16.msra.mxu0 0
        %1924 = vmatpush.bf16.msra.mxu0 0
        %1925 = vmatpush.bf16.msra.mxu0 0
        %1926 = vmatpush.bf16.msra.mxu0 0
        %1927 = vmatpush.bf16.msra.mxu0 0
        %1928 = vmatpush.bf16.msra.mxu0 0
        %1929 = vmatpush.bf16.msra.mxu0 %v1882
        %1930 = vmatmul.bf16.gmra.mxu0 %v1870
        %v1931 = vpop.f32.mrf.mxu0
        %v1932 = vadd.f32 0.0, %v1931
        %v1933 = vpop.f32.mrf.mxu0
        %v1934 = vadd.f32 0.0, %v1933
        %1935 = vmatmul.bf16.gmra.mxu0 %v1873
        %v1936 = vpop.f32.mrf.mxu0
        %v1937 = vadd.f32 0.0, %v1936
        %v1938 = vpop.f32.mrf.mxu0
        %v1939 = vadd.f32 0.0, %v1938
        %1940 = vdwg.mxu0
        %v1941 = vadd.f32 %v1405, %v1894
        %v1942 = vadd.f32 %v1424, %v1913
        %v1943 = vadd.f32 %v1443, %v1932
        %v1944 = vadd.f32 %v1407, %v1896
        %v1945 = vadd.f32 %v1426, %v1915
        %v1946 = vadd.f32 %v1445, %v1934
        %v1947 = vadd.f32 %v1410, %v1899
        %v1948 = vadd.f32 %v1429, %v1918
        %v1949 = vadd.f32 %v1448, %v1937
        %v1950 = vadd.f32 %v1412, %v1901
        %v1951 = vadd.f32 %v1431, %v1920
        %v1952 = vadd.f32 %v1450, %v1939
        %s1953 = scalar_lea.vmem %s5, 1152
        %v1954 = vld [vmem:[%s1953] sm:$0xff]
        %v1955 = vld [vmem:[%s1953 + $0x8] sm:$0xf]
        %v1956 = vld [vmem:[%s1953 + $0xc] sm:$0xff]
        %v1957 = vld [vmem:[%s1953 + $0x14] sm:$0xf]
        %v1958 = vld [vmem:[%s1953 + $0x18] sm:$0xff]
        %v1959 = vld [vmem:[%s1953 + $0x20] sm:$0xf]
        %v1960 = vld [vmem:[%s1953 + $0x24] sm:$0xff]
        %v1961 = vld [vmem:[%s1953 + $0x2c] sm:$0xf]
        %v1962 = vld [vmem:[%s1953 + $0x30] sm:$0xff]
        %v1963 = vld [vmem:[%s1953 + $0x38] sm:$0xf]
        %v1964 = vld [vmem:[%s1953 + $0x3c] sm:$0xff]
        %v1965 = vld [vmem:[%s1953 + $0x44] sm:$0xf]
        %v1966 = vld [vmem:[%s1953 + $0x48] sm:$0xff]
        %v1967 = vld [vmem:[%s1953 + $0x50] sm:$0xf]
        %v1968 = vld [vmem:[%s1953 + $0x54] sm:$0xff]
        %v1969 = vld [vmem:[%s1953 + $0x5c] sm:$0xf]
        %v1970 = vld [vmem:[%s1953 + $0x60] sm:$0xff]
        %v1971 = vld [vmem:[%s1953 + $0x68] sm:$0xf]
        %v1972 = vld [vmem:[%s1953 + $0x6c] sm:$0xff]
        %v1973 = vld [vmem:[%s1953 + $0x74] sm:$0xf]
        %v1974 = vld [vmem:[%s1953 + $0x78] sm:$0xff]
        %v1975 = vld [vmem:[%s1953 + $0x80] sm:$0xf]
        %v1976 = vld [vmem:[%s1953 + $0x84] sm:$0xff]
        %v1977 = vld [vmem:[%s1953 + $0x8c] sm:$0xf]
        %v1978 = vld [vmem:[%s1953 + $0x90] sm:$0xff]
        %v1979 = vld [vmem:[%s1953 + $0x98] sm:$0xf]
        %v1980 = vld [vmem:[%s1953 + $0x9c] sm:$0xff]
        %v1981 = vld [vmem:[%s1953 + $0xa4] sm:$0xf]
        %v1982 = vld [vmem:[%s1953 + $0xa8] sm:$0xff]
        %v1983 = vld [vmem:[%s1953 + $0xb0] sm:$0xf]
        %v1984 = vld [vmem:[%s1953 + $0xb4] sm:$0xff]
        %v1985 = vld [vmem:[%s1953 + $0xbc] sm:$0xf]
        %v1986 = vld [vmem:[%s1953 + $0xc0] sm:$0xff]
        %v1987 = vld [vmem:[%s1953 + $0xc8] sm:$0xf]
        %v1988 = vld [vmem:[%s1953 + $0xcc] sm:$0xff]
        %v1989 = vld [vmem:[%s1953 + $0xd4] sm:$0xf]
        %v1990 = vld [vmem:[%s1953 + $0xd8] sm:$0xff]
        %v1991 = vld [vmem:[%s1953 + $0xe0] sm:$0xf]
        %v1992 = vld [vmem:[%s1953 + $0xe4] sm:$0xff]
        %v1993 = vld [vmem:[%s1953 + $0xec] sm:$0xf]
        %v1994 = vld [vmem:[%s1953 + $0xf0] sm:$0xff]
        %v1995 = vld [vmem:[%s1953 + $0xf8] sm:$0xf]
        %v1996 = vld [vmem:[%s1953 + $0xfc] sm:$0xff]
        %v1997 = vld [vmem:[%s1953 + $0x104] sm:$0xf]
        %v1998 = vld [vmem:[%s1953 + $0x108] sm:$0xff]
        %v1999 = vld [vmem:[%s1953 + $0x110] sm:$0xf]
        %v2000 = vld [vmem:[%s1953 + $0x114] sm:$0xff]
        %v2001 = vld [vmem:[%s1953 + $0x11c] sm:$0xf]
        %v2002 = vld [vmem:[%s1953 + $0x120] sm:$0xff]
        %v2003 = vld [vmem:[%s1953 + $0x128] sm:$0xf]
        %v2004 = vld [vmem:[%s1953 + $0x12c] sm:$0xff]
        %v2005 = vld [vmem:[%s1953 + $0x134] sm:$0xf]
        %v2006 = vld [vmem:[%s1953 + $0x138] sm:$0xff]
        %v2007 = vld [vmem:[%s1953 + $0x140] sm:$0xf]
        %v2008 = vld [vmem:[%s1953 + $0x144] sm:$0xff]
        %v2009 = vld [vmem:[%s1953 + $0x14c] sm:$0xf]
        %v2010 = vld [vmem:[%s1953 + $0x150] sm:$0xff]
        %v2011 = vld [vmem:[%s1953 + $0x158] sm:$0xf]
        %v2012 = vld [vmem:[%s1953 + $0x15c] sm:$0xff]
        %v2013 = vld [vmem:[%s1953 + $0x164] sm:$0xf]
        %v2014 = vld [vmem:[%s1953 + $0x168] sm:$0xff]
        %v2015 = vld [vmem:[%s1953 + $0x170] sm:$0xf]
        %v2016 = vld [vmem:[%s1953 + $0x174] sm:$0xff]
        %v2017 = vld [vmem:[%s1953 + $0x17c] sm:$0xf]
        %v2082 = vunpack.c.l.b16 %v1954
        %v2083 = vunpack.c.h.b16 %v1954
        %v2084 = vunpack.c.l.b16 %v1955
        %v2085 = vunpack.c.l.b16 %v1956
        %v2086 = vunpack.c.h.b16 %v1956
        %v2087 = vunpack.c.l.b16 %v1957
        %v2088 = vunpack.c.l.b16 %v1958
        %v2089 = vunpack.c.h.b16 %v1958
        %v2090 = vunpack.c.l.b16 %v1959
        %v2091 = vunpack.c.l.b16 %v1960
        %v2092 = vunpack.c.h.b16 %v1960
        %v2093 = vunpack.c.l.b16 %v1961
        %v2094 = vunpack.c.l.b16 %v1962
        %v2095 = vunpack.c.h.b16 %v1962
        %v2096 = vunpack.c.l.b16 %v1963
        %v2097 = vunpack.c.l.b16 %v1964
        %v2098 = vunpack.c.h.b16 %v1964
        %v2099 = vunpack.c.l.b16 %v1965
        %v2100 = vunpack.c.l.b16 %v1966
        %v2101 = vunpack.c.h.b16 %v1966
        %v2102 = vunpack.c.l.b16 %v1967
        %v2103 = vunpack.c.l.b16 %v1968
        %v2104 = vunpack.c.h.b16 %v1968
        %v2105 = vunpack.c.l.b16 %v1969
        %v2106 = vunpack.c.l.b16 %v1970
        %v2107 = vunpack.c.h.b16 %v1970
        %v2108 = vunpack.c.l.b16 %v1971
        %v2109 = vunpack.c.l.b16 %v1972
        %v2110 = vunpack.c.h.b16 %v1972
        %v2111 = vunpack.c.l.b16 %v1973
        %v2112 = vunpack.c.l.b16 %v1974
        %v2113 = vunpack.c.h.b16 %v1974
        %v2114 = vunpack.c.l.b16 %v1975
        %v2115 = vunpack.c.l.b16 %v1976
        %v2116 = vunpack.c.h.b16 %v1976
        %v2117 = vunpack.c.l.b16 %v1977
        %v2118 = vunpack.c.l.b16 %v1978
        %v2119 = vunpack.c.h.b16 %v1978
        %v2120 = vunpack.c.l.b16 %v1979
        %v2121 = vunpack.c.l.b16 %v1980
        %v2122 = vunpack.c.h.b16 %v1980
        %v2123 = vunpack.c.l.b16 %v1981
        %v2124 = vunpack.c.l.b16 %v1982
        %v2125 = vunpack.c.h.b16 %v1982
        %v2126 = vunpack.c.l.b16 %v1983
        %v2127 = vunpack.c.l.b16 %v1984
        %v2128 = vunpack.c.h.b16 %v1984
        %v2129 = vunpack.c.l.b16 %v1985
        %v2130 = vunpack.c.l.b16 %v1986
        %v2131 = vunpack.c.h.b16 %v1986
        %v2132 = vunpack.c.l.b16 %v1987
        %v2133 = vunpack.c.l.b16 %v1988
        %v2134 = vunpack.c.h.b16 %v1988
        %v2135 = vunpack.c.l.b16 %v1989
        %v2136 = vunpack.c.l.b16 %v1990
        %v2137 = vunpack.c.h.b16 %v1990
        %v2138 = vunpack.c.l.b16 %v1991
        %v2139 = vunpack.c.l.b16 %v1992
        %v2140 = vunpack.c.h.b16 %v1992
        %v2141 = vunpack.c.l.b16 %v1993
        %v2142 = vunpack.c.l.b16 %v1994
        %v2143 = vunpack.c.h.b16 %v1994
        %v2144 = vunpack.c.l.b16 %v1995
        %v2145 = vunpack.c.l.b16 %v1996
        %v2146 = vunpack.c.h.b16 %v1996
        %v2147 = vunpack.c.l.b16 %v1997
        %v2148 = vunpack.c.l.b16 %v1998
        %v2149 = vunpack.c.h.b16 %v1998
        %v2150 = vunpack.c.l.b16 %v1999
        %v2151 = vunpack.c.l.b16 %v2000
        %v2152 = vunpack.c.h.b16 %v2000
        %v2153 = vunpack.c.l.b16 %v2001
        %v2154 = vunpack.c.l.b16 %v2002
        %v2155 = vunpack.c.h.b16 %v2002
        %v2156 = vunpack.c.l.b16 %v2003
        %v2157 = vunpack.c.l.b16 %v2004
        %v2158 = vunpack.c.h.b16 %v2004
        %v2159 = vunpack.c.l.b16 %v2005
        %v2160 = vunpack.c.l.b16 %v2006
        %v2161 = vunpack.c.h.b16 %v2006
        %v2162 = vunpack.c.l.b16 %v2007
        %v2163 = vunpack.c.l.b16 %v2008
        %v2164 = vunpack.c.h.b16 %v2008
        %v2165 = vunpack.c.l.b16 %v2009
        %v2166 = vunpack.c.l.b16 %v2010
        %v2167 = vunpack.c.h.b16 %v2010
        %v2168 = vunpack.c.l.b16 %v2011
        %v2169 = vunpack.c.l.b16 %v2012
        %v2170 = vunpack.c.h.b16 %v2012
        %v2171 = vunpack.c.l.b16 %v2013
        %v2172 = vunpack.c.l.b16 %v2014
        %v2173 = vunpack.c.h.b16 %v2014
        %v2174 = vunpack.c.l.b16 %v2015
        %v2175 = vunpack.c.l.b16 %v2016
        %v2176 = vunpack.c.h.b16 %v2016
        %v2177 = vunpack.c.l.b16 %v2017
        %v2178 = vpack.c.b16 %v2085, %v2082
        %v2179 = vpack.c.b16 %v2086, %v2083
        %v2180 = vpack.c.b16 %v2087, %v2084
        %v2181 = vpack.c.b16 %v2091, %v2088
        %v2182 = vpack.c.b16 %v2092, %v2089
        %v2183 = vpack.c.b16 %v2093, %v2090
        %v2184 = vpack.c.b16 %v2097, %v2094
        %v2185 = vpack.c.b16 %v2098, %v2095
        %v2186 = vpack.c.b16 %v2099, %v2096
        %v2187 = vpack.c.b16 %v2103, %v2100
        %v2188 = vpack.c.b16 %v2104, %v2101
        %v2189 = vpack.c.b16 %v2105, %v2102
        %v2190 = vpack.c.b16 %v2109, %v2106
        %v2191 = vpack.c.b16 %v2110, %v2107
        %v2192 = vpack.c.b16 %v2111, %v2108
        %v2193 = vpack.c.b16 %v2115, %v2112
        %v2194 = vpack.c.b16 %v2116, %v2113
        %v2195 = vpack.c.b16 %v2117, %v2114
        %v2196 = vpack.c.b16 %v2121, %v2118
        %v2197 = vpack.c.b16 %v2122, %v2119
        %v2198 = vpack.c.b16 %v2123, %v2120
        %v2199 = vpack.c.b16 %v2127, %v2124
        %v2200 = vpack.c.b16 %v2128, %v2125
        %v2201 = vpack.c.b16 %v2129, %v2126
        %v2202 = vpack.c.b16 %v2133, %v2130
        %v2203 = vpack.c.b16 %v2134, %v2131
        %v2204 = vpack.c.b16 %v2135, %v2132
        %v2205 = vpack.c.b16 %v2139, %v2136
        %v2206 = vpack.c.b16 %v2140, %v2137
        %v2207 = vpack.c.b16 %v2141, %v2138
        %v2208 = vpack.c.b16 %v2145, %v2142
        %v2209 = vpack.c.b16 %v2146, %v2143
        %v2210 = vpack.c.b16 %v2147, %v2144
        %v2211 = vpack.c.b16 %v2151, %v2148
        %v2212 = vpack.c.b16 %v2152, %v2149
        %v2213 = vpack.c.b16 %v2153, %v2150
        %v2214 = vpack.c.b16 %v2157, %v2154
        %v2215 = vpack.c.b16 %v2158, %v2155
        %v2216 = vpack.c.b16 %v2159, %v2156
        %v2217 = vpack.c.b16 %v2163, %v2160
        %v2218 = vpack.c.b16 %v2164, %v2161
        %v2219 = vpack.c.b16 %v2165, %v2162
        %v2220 = vpack.c.b16 %v2169, %v2166
        %v2221 = vpack.c.b16 %v2170, %v2167
        %v2222 = vpack.c.b16 %v2171, %v2168
        %v2223 = vpack.c.b16 %v2175, %v2172
        %v2224 = vpack.c.b16 %v2176, %v2173
        %v2225 = vpack.c.b16 %v2177, %v2174
        %2274 = vmatpush.bf16.msra.mxu0 %v2199
        %2275 = vmatpush.bf16.msra.mxu0 %v2196
        %2276 = vmatpush.bf16.msra.mxu0 %v2193
        %2277 = vmatpush.bf16.msra.mxu0 %v2190
        %2278 = vmatpush.bf16.msra.mxu0 %v2187
        %2279 = vmatpush.bf16.msra.mxu0 %v2184
        %2280 = vmatpush.bf16.msra.mxu0 %v2181
        %2281 = vmatpush.bf16.msra.mxu0 %v2178
        %2282 = vmatmul.bf16.gmra.mxu0 %v473
        %v2283 = vpop.f32.mrf.mxu0
        %v2284 = vadd.f32 0.0, %v2283
        %v2285 = vpop.f32.mrf.mxu0
        %2286 = vdwg.mxu0
        %2287 = vmatpush.bf16.msra.mxu0 %v2223
        %2288 = vmatpush.bf16.msra.mxu0 %v2220
        %2289 = vmatpush.bf16.msra.mxu0 %v2217
        %2290 = vmatpush.bf16.msra.mxu0 %v2214
        %2291 = vmatpush.bf16.msra.mxu0 %v2211
        %2292 = vmatpush.bf16.msra.mxu0 %v2208
        %2293 = vmatpush.bf16.msra.mxu0 %v2205
        %2294 = vmatpush.bf16.msra.mxu0 %v2202
        %2295 = vmatmul.bf16.gmra.mxu0 %v474
        %v2296 = vpop.f32.mrf.mxu0
        %v2297 = vadd.f32 %v2284, %v2296
        %v2298 = vpop.f32.mrf.mxu0
        %2299 = vdwg.mxu0
        %2300 = vmatpush.bf16.msra.mxu0 %v2200
        %2301 = vmatpush.bf16.msra.mxu0 %v2197
        %2302 = vmatpush.bf16.msra.mxu0 %v2194
        %2303 = vmatpush.bf16.msra.mxu0 %v2191
        %2304 = vmatpush.bf16.msra.mxu0 %v2188
        %2305 = vmatpush.bf16.msra.mxu0 %v2185
        %2306 = vmatpush.bf16.msra.mxu0 %v2182
        %2307 = vmatpush.bf16.msra.mxu0 %v2179
        %2308 = vmatmul.bf16.gmra.mxu0 %v473
        %v2309 = vpop.f32.mrf.mxu0
        %v2310 = vadd.f32 0.0, %v2309
        %v2311 = vpop.f32.mrf.mxu0
        %2312 = vdwg.mxu0
        %2313 = vmatpush.bf16.msra.mxu0 %v2224
        %2314 = vmatpush.bf16.msra.mxu0 %v2221
        %2315 = vmatpush.bf16.msra.mxu0 %v2218
        %2316 = vmatpush.bf16.msra.mxu0 %v2215
        %2317 = vmatpush.bf16.msra.mxu0 %v2212
        %2318 = vmatpush.bf16.msra.mxu0 %v2209
        %2319 = vmatpush.bf16.msra.mxu0 %v2206
        %2320 = vmatpush.bf16.msra.mxu0 %v2203
        %2321 = vmatmul.bf16.gmra.mxu0 %v474
        %v2322 = vpop.f32.mrf.mxu0
        %v2323 = vadd.f32 %v2310, %v2322
        %v2324 = vpop.f32.mrf.mxu0
        %2325 = vdwg.mxu0
        %2326 = vmatpush.bf16.msra.mxu0 %v2201
        %2327 = vmatpush.bf16.msra.mxu0 %v2198
        %2328 = vmatpush.bf16.msra.mxu0 %v2195
        %2329 = vmatpush.bf16.msra.mxu0 %v2192
        %2330 = vmatpush.bf16.msra.mxu0 %v2189
        %2331 = vmatpush.bf16.msra.mxu0 %v2186
        %2332 = vmatpush.bf16.msra.mxu0 %v2183
        %2333 = vmatpush.bf16.msra.mxu0 %v2180
        %2334 = vmatmul.bf16.gmra.mxu0 %v473
        %v2335 = vpop.f32.mrf.mxu0
        %v2336 = vadd.f32 0.0, %v2335
        %v2337 = vpop.f32.mrf.mxu0
        %2338 = vdwg.mxu0
        %2339 = vmatpush.bf16.msra.mxu0 %v2225
        %2340 = vmatpush.bf16.msra.mxu0 %v2222
        %2341 = vmatpush.bf16.msra.mxu0 %v2219
        %2342 = vmatpush.bf16.msra.mxu0 %v2216
        %2343 = vmatpush.bf16.msra.mxu0 %v2213
        %2344 = vmatpush.bf16.msra.mxu0 %v2210
        %2345 = vmatpush.bf16.msra.mxu0 %v2207
        %2346 = vmatpush.bf16.msra.mxu0 %v2204
        %2347 = vmatmul.bf16.gmra.mxu0 %v474
        %v2348 = vpop.f32.mrf.mxu0
        %v2349 = vadd.f32 %v2336, %v2348
        %v2350 = vpop.f32.mrf.mxu0
        %2351 = vdwg.mxu0
        %v2352 = vpack.c.bf16 %v2297, %v2297
        %v2353 = vpack.c.bf16 %v2323, %v2323
        %v2354 = vpack.c.bf16 %v2349, %v2349
        %s2355 = scalar_lea.vmem %s6, 48
        %v2356 = vld [vmem:[%s2355] sm:$0xf]
        %v2357 = vld [vmem:[%s2355 + $0x4] sm:$0xf]
        %v2358 = vld [vmem:[%s2355 + $0x8] sm:$0xf]
        %v2359 = vld [vmem:[%s2355 + $0xc] sm:$0xf]
        %v2364 = vunpack.c.l.b16 %v2356
        %v2365 = vunpack.c.l.b16 %v2357
        %v2366 = vunpack.c.l.b16 %v2358
        %v2367 = vunpack.c.l.b16 %v2359
        %v2368 = vpack.c.b16 %v2365, %v2364
        %v2369 = vpack.c.b16 %v2367, %v2366
        %v2371 = vsel %vm347, %v2368, 0
        %v2374 = vsel %vm347, %v2369, 0
        %v2377 = vsel %vm1303, %v2352, 0
        %v2380 = vsel %vm1303, %v2353, 0
        %v2383 = vsel %vm1303, %v2354, 0
        %2385 = vmatpush.bf16.msra.mxu0 0
        %2386 = vmatpush.bf16.msra.mxu0 0
        %2387 = vmatpush.bf16.msra.mxu0 0
        %2388 = vmatpush.bf16.msra.mxu0 0
        %2389 = vmatpush.bf16.msra.mxu0 0
        %2390 = vmatpush.bf16.msra.mxu0 0
        %2391 = vmatpush.bf16.msra.mxu0 0
        %2392 = vmatpush.bf16.msra.mxu0 %v2377
        %2393 = vmatmul.bf16.gmra.mxu0 %v2371
        %v2394 = vpop.f32.mrf.mxu0
        %v2395 = vadd.f32 0.0, %v2394
        %v2396 = vpop.f32.mrf.mxu0
        %v2397 = vadd.f32 0.0, %v2396
        %2398 = vmatmul.bf16.gmra.mxu0 %v2374
        %v2399 = vpop.f32.mrf.mxu0
        %v2400 = vadd.f32 0.0, %v2399
        %v2401 = vpop.f32.mrf.mxu0
        %v2402 = vadd.f32 0.0, %v2401
        %2403 = vdwg.mxu0
        %2404 = vmatpush.bf16.msra.mxu0 0
        %2405 = vmatpush.bf16.msra.mxu0 0
        %2406 = vmatpush.bf16.msra.mxu0 0
        %2407 = vmatpush.bf16.msra.mxu0 0
        %2408 = vmatpush.bf16.msra.mxu0 0
        %2409 = vmatpush.bf16.msra.mxu0 0
        %2410 = vmatpush.bf16.msra.mxu0 0
        %2411 = vmatpush.bf16.msra.mxu0 %v2380
        %2412 = vmatmul.bf16.gmra.mxu0 %v2371
        %v2413 = vpop.f32.mrf.mxu0
        %v2414 = vadd.f32 0.0, %v2413
        %v2415 = vpop.f32.mrf.mxu0
        %v2416 = vadd.f32 0.0, %v2415
        %2417 = vmatmul.bf16.gmra.mxu0 %v2374
        %v2418 = vpop.f32.mrf.mxu0
        %v2419 = vadd.f32 0.0, %v2418
        %v2420 = vpop.f32.mrf.mxu0
        %v2421 = vadd.f32 0.0, %v2420
        %2422 = vdwg.mxu0
        %2423 = vmatpush.bf16.msra.mxu0 0
        %2424 = vmatpush.bf16.msra.mxu0 0
        %2425 = vmatpush.bf16.msra.mxu0 0
        %2426 = vmatpush.bf16.msra.mxu0 0
        %2427 = vmatpush.bf16.msra.mxu0 0
        %2428 = vmatpush.bf16.msra.mxu0 0
        %2429 = vmatpush.bf16.msra.mxu0 0
        %2430 = vmatpush.bf16.msra.mxu0 %v2383
        %2431 = vmatmul.bf16.gmra.mxu0 %v2371
        %v2432 = vpop.f32.mrf.mxu0
        %v2433 = vadd.f32 0.0, %v2432
        %v2434 = vpop.f32.mrf.mxu0
        %v2435 = vadd.f32 0.0, %v2434
        %2436 = vmatmul.bf16.gmra.mxu0 %v2374
        %v2437 = vpop.f32.mrf.mxu0
        %v2438 = vadd.f32 0.0, %v2437
        %v2439 = vpop.f32.mrf.mxu0
        %v2440 = vadd.f32 0.0, %v2439
        %2441 = vdwg.mxu0
        %v2442 = vadd.f32 %v1941, %v2395
        %v2443 = vadd.f32 %v1942, %v2414
        %v2444 = vadd.f32 %v1943, %v2433
        %v2445 = vadd.f32 %v1944, %v2397
        %v2446 = vadd.f32 %v1945, %v2416
        %v2447 = vadd.f32 %v1946, %v2435
        %v2448 = vadd.f32 %v1947, %v2400
        %v2449 = vadd.f32 %v1948, %v2419
        %v2450 = vadd.f32 %v1949, %v2438
        %v2451 = vadd.f32 %v1950, %v2402
        %v2452 = vadd.f32 %v1951, %v2421
        %v2453 = vadd.f32 %v1952, %v2440
        %v2454 = vld [vmem:[%s7] sm:$0xff]
        %v2455 = vld [vmem:[%s7 + $0x8] sm:$0xff]
        %v2456 = vld [vmem:[%s7 + $0x10] sm:$0xff]
        %v2457 = vld [vmem:[%s7 + $0x18] sm:$0xff]
        %2459 = vset.pattern.permute.xlu0 0
        %2460 = vperm.xlu0 %2459, %v2454
        %v2461 = vpop.permute.xlu0 %2460
        %2464 = vset.pattern.permute.xlu0 0
        %2465 = vperm.xlu0 %2464, %v2455
        %v2466 = vpop.permute.xlu0 %2465
        %2469 = vset.pattern.permute.xlu0 0
        %2470 = vperm.xlu0 %2469, %v2456
        %v2471 = vpop.permute.xlu0 %2470
        %2474 = vset.pattern.permute.xlu0 0
        %2475 = vperm.xlu0 %2474, %v2457
        %v2476 = vpop.permute.xlu0 %2475
        %v2478 = vadd.f32 %v2442, %v2461
        %v2479 = vadd.f32 %v2443, %v2461
        %v2480 = vadd.f32 %v2444, %v2461
        %v2481 = vadd.f32 %v2445, %v2466
        %v2482 = vadd.f32 %v2446, %v2466
        %v2483 = vadd.f32 %v2447, %v2466
        %v2484 = vadd.f32 %v2448, %v2471
        %v2485 = vadd.f32 %v2449, %v2471
        %v2486 = vadd.f32 %v2450, %v2471
        %v2487 = vadd.f32 %v2451, %v2476
        %v2488 = vadd.f32 %v2452, %v2476
        %v2489 = vadd.f32 %v2453, %v2476
        %2490 = vst [vmem:[%s311] sm:$0xff] %v2478
        %2491 = vst [vmem:[%s311 + $0x8] sm:$0xff] %v2479
        %vm2492 = vcmask 269312
        %2493 = vst.msk [vmem:[%s311 + $0x10] sm:$0xff] %vm2492, %v2480
        %2494 = vst [vmem:[%s311 + $0x18] sm:$0xff] %v2481
        %2495 = vst [vmem:[%s311 + $0x20] sm:$0xff] %v2482
        %2496 = vst.msk [vmem:[%s311 + $0x28] sm:$0xff] %vm2492, %v2483
        %2497 = vst [vmem:[%s311 + $0x30] sm:$0xff] %v2484
        %2498 = vst [vmem:[%s311 + $0x38] sm:$0xff] %v2485
        %2499 = vst.msk [vmem:[%s311 + $0x40] sm:$0xff] %vm2492, %v2486
        %2500 = vst [vmem:[%s311 + $0x48] sm:$0xff] %v2487
        %2501 = vst [vmem:[%s311 + $0x50] sm:$0xff] %v2488
        %2502 = vst.msk [vmem:[%s311 + $0x58] sm:$0xff] %vm2492, %v2489
        %s2503 = sand.u32 %s208, 1
        %s2504 = scalar_lea.sflag [#allocation3], %s2503
        %s2505 = sand.u32 %s208, 1
        %s2506 = smul.addr %s2505, 96
        %s2507 = scalar_lea.vmem [#allocation2], %s2506
        // Predicated region
        $region53: #{tpu_custom_call.1} parent=51 // pred_check
          %p2508 = pneg %p218
        $region54: #{tpu_custom_call.1} parent=51 // pred_check_branch
          %2510 = sbr.rel (%p2508) target = $region56
        $region55: #{tpu_custom_call.1} parent=51 // pred_region
          %2512 = vsyncadd %s2504, 0
          %s2513 = smul.addr %s22, 12
          %s2514 = smul.addr %s2513, 8
          %s2515 = scalar_lea.hbm %s8, %s2514
          %s2516 = sshll.u32 %s2507, 4
          %s2517 = int_to_ptr.vmem [resolvable:$true] %s2516
          %s2518 = sshll.u32 %s2515, 4
          %s2519 = int_to_ptr.hbm [resolvable:$true] %s2518
          %2524 = dma.vmem_to_hbm [thread:$0]  %s2517, 1536, %s2519, %s2504, 384, 384, 24
        $region56: #{tpu_custom_call.1} parent=51 // pred_fallthru
          _
      $region52: #{tpu_custom_call.1} parent=5 // pred_fallthru
        _
      %p2525 = scmp.le.s32.totalorder 2, %s17
      // Predicated region
      $region57: #{tpu_custom_call.1} parent=5 // pred_check
        %p2526 = pneg %p2525
      $region58: #{tpu_custom_call.1} parent=5 // pred_check_branch
        %2528 = sbr.rel (%p2526) target = $region60
      $region59: #{tpu_custom_call.1} parent=5 // pred_region
        %s2529 = ssub.s32 %s17, 2
        // Predicated region
        $region61: #{tpu_custom_call.1} parent=59 // pred_check
          %p2530 = pneg %p224
        $region62: #{tpu_custom_call.1} parent=59 // pred_check_branch
          %2532 = sbr.rel (%p2530) target = $region64
        $region63: #{tpu_custom_call.1} parent=59 // pred_region
          %s2533 = sand.u32 %s209, 1
          %s2534 = scalar_lea.sflag [#allocation3], %s2533
          %s2535 = sand.u32 %s209, 1
          %s2536 = smul.addr %s2535, 96
          %s2537 = scalar_lea.vmem [#allocation2], %s2536
          %2539 = dma.done %s2534, 1536
        $region64: #{tpu_custom_call.1} parent=59 // pred_fallthru
          _
      $region60: #{tpu_custom_call.1} parent=5 // pred_fallthru
        _
    $region6: #{tpu_custom_call.1} parent=1 // loop_footer
      %s21 = sadd.s32 1, %s17
    $region7: #{tpu_custom_call.1} parent=1 // loop_footer_branch
      %16 = sbr.rel target = $region3
    $region8: #{tpu_custom_call.1} parent=1 // loop_exit
      _
    %2540 = vsyncpa [#allocation3], 1
    %s2541 = scalar_lea.sflag [#allocation3], 1
    %2542 = vsyncpa %s2541, 1

</llo_original>
